<compile_context>
chip_gen: v6e
topology: v6e:2x2x1
jax: 0.10.0
libtpu: 0.0.40
codegen_flags: <defaults>
</compile_context>

<pallas_src>
import jax
import jax.numpy as jnp
from jax.experimental import pallas as pl
from jax.experimental.pallas import tpu as pltpu


def _round_up(x, m):
    return (x + m - 1) // m * m


def _cdiv(a, b):
    return -(-a // b)


# --------------------------------------------------------------------------- #
# Kernel: fused 4-layer MLP on one batch tile; weights resident in VMEM.
# --------------------------------------------------------------------------- #
def _mlp_kernel(x_ref,
                w1_ref, b1_ref,
                w2_ref, b2_ref,
                w3_ref, b3_ref,
                w4_ref, b4_ref,
                out_ref):
    def lrelu(v):
        # F.leaky_relu(v, 0.1)
        return jnp.where(v > 0, v, 0.1 * v)

    # bf16 operands -> native MXU path; f32 accumulation; f32 bias/activation.
    x = x_ref[...].astype(jnp.bfloat16)

    h = jnp.dot(x, w1_ref[...], preferred_element_type=jnp.float32) + b1_ref[...]
    h = lrelu(h)
    h = jnp.dot(h.astype(jnp.bfloat16), w2_ref[...],
                preferred_element_type=jnp.float32) + b2_ref[...]
    h = lrelu(h)
    h = jnp.dot(h.astype(jnp.bfloat16), w3_ref[...],
                preferred_element_type=jnp.float32) + b3_ref[...]
    h = lrelu(h)
    out = jnp.dot(h.astype(jnp.bfloat16), w4_ref[...],
                  preferred_element_type=jnp.float32) + b4_ref[...]

    out_ref[...] = out.astype(out_ref.dtype)


# --------------------------------------------------------------------------- #
# Parameter preparation (one-time; hoisted out of the per-call hot path).
# --------------------------------------------------------------------------- #
def init_params(key, dimension):
    """nn.Linear-style init: U(-k, k), k = 1/sqrt(fan_in). Weights stored (in, out)."""
    n_in = 10
    n_out = dimension * 2 * 6
    h = n_out * 8

    sizes = [(n_in, h), (h, h), (h, h), (h, n_out)]
    params = {}
    keys = jax.random.split(key, 2 * len(sizes))
    for i, (fi, fo) in enumerate(sizes):
        k = 1.0 / jnp.sqrt(jnp.float32(fi))
        params[f"w{i+1}"] = jax.random.uniform(
            keys[2 * i], (fi, fo), jnp.float32, minval=-k, maxval=k)
        params[f"b{i+1}"] = jax.random.uniform(
            keys[2 * i + 1], (1, fo), jnp.float32, minval=-k, maxval=k)
    return params


def prepare_params(params, *, n_in_pad=16, lane=128):
    """One-time conversion of f32 nn.Linear params into kernel layout.

    * w1..w4 cast to bf16 (halves resident-weight VMEM + HBM weight DMA).
    * w1 zero-padded on the K axis 10 -> 16 (bf16 sublane packing).
    * w4 / b4 zero-padded on the output axis n_out -> 128 (lane-dense stores).
    Biases stay f32.  Do this ONCE at init; the forward wrapper never casts.
    """
    n_in, _ = params["w1"].shape
    n_out = params["w4"].shape[1]
    n_in_p = _round_up(max(n_in, n_in_pad), 8)
    n_out_p = _round_up(n_out, lane)

    return {
        "w1": jnp.pad(params["w1"], ((0, n_in_p - n_in), (0, 0))).astype(jnp.bfloat16),
        "b1": params["b1"],
        "w2": params["w2"].astype(jnp.bfloat16),
        "b2": params["b2"],
        "w3": params["w3"].astype(jnp.bfloat16),
        "b3": params["b3"],
        "w4": jnp.pad(params["w4"], ((0, 0), (0, n_out_p - n_out))).astype(jnp.bfloat16),
        "b4": jnp.pad(params["b4"], ((0, 0), (0, n_out_p - n_out))),
        # static metadata (Python ints; forward uses them for slicing)
        "n_in": n_in,
        "n_out": n_out,
    }


# --------------------------------------------------------------------------- #
# Forward wrapper.
# --------------------------------------------------------------------------- #
def complex_fc_generator_lpf_forward(x, kparams, *, tile_b=512):
    """Run the fused MLP Pallas kernel.

    x:        (B, 10) float32
    kparams:  output of prepare_params() (bf16 padded weights, f32 biases)
    returns:  (B, n_out) float32
    """
    w1, b1 = kparams["w1"], kparams["b1"]
    w2, b2 = kparams["w2"], kparams["b2"]
    w3, b3 = kparams["w3"], kparams["b3"]
    w4, b4 = kparams["w4"], kparams["b4"]
    n_out = kparams["n_out"]

    B, n_in = x.shape
    n_in_p = w1.shape[0]      # 16
    n_out_p = w4.shape[1]     # 128

    # --- batch tiling --------------------------------------------------------
    # Default tile 512 rows (overhead-amortized, MXU-friendly).  Guarantee at
    # least 2 grid steps whenever the batch exceeds 128 rows so the "parallel"
    # axis shards across both TensorCores on v7x; tile stays a multiple of 8.
    B8 = _round_up(B, 8)
    nb = max(1, _cdiv(B8, tile_b))
    if nb == 1 and B8 > 128:
        nb = 2
    tb = _round_up(_cdiv(B8, nb), 8)
    B_p = tb * nb

    # Pad batch rows (to B_p) and the K axis (10 -> 16) in a single pad op.
    xp = jnp.pad(x, ((0, B_p - B), (0, n_in_p - n_in)))

    def resident(arr):
        # Whole array; same block every grid step -> stays in VMEM, no re-DMA.
        return pl.BlockSpec(arr.shape, lambda i: (0, 0))

    out_p = pl.pallas_call(
        _mlp_kernel,
        out_shape=jax.ShapeDtypeStruct((B_p, n_out_p), jnp.float32),
        grid=(nb,),
        in_specs=[
            pl.BlockSpec((tb, n_in_p), lambda i: (i, 0)),   # x: stream over batch
            resident(w1), resident(b1),
            resident(w2), resident(b2),
            resident(w3), resident(b3),
            resident(w4), resident(b4),
        ],
        out_specs=pl.BlockSpec((tb, n_out_p), lambda i: (i, 0)),
        compiler_params=pltpu.CompilerParams(
            dimension_semantics=("parallel",),   # batch tiles shard across TCs
            vmem_limit_bytes=32 << 20,           # ~3 MiB live at tile_b=512
        ),
    )(xp, w1, b1, w2, b2, w3, b3, w4, b4)

    # TODO(synk): if the consumer can accept the 128-wide padded output, skip
    # this slice (saves one full output HBM round-trip at large B).
    return out_p[:B, :n_out]


# --------------------------------------------------------------------------- #
# Plain-JAX reference matching the kernel's bf16-weight / f32-accum math.
# (bf16 weights deviate from the pure-f32 PyTorch module at ~1e-2 rel error.)
# --------------------------------------------------------------------------- #
def reference_forward(x, params):
    def lrelu(v):
        return jnp.where(v > 0, v, 0.1 * v)

    def dense(a, w, b):
        return jnp.dot(a.astype(jnp.bfloat16), w.astype(jnp.bfloat16),
                       preferred_element_type=jnp.float32) + b

    h = lrelu(dense(x, params["w1"], params["b1"]))
    h = lrelu(dense(h, params["w2"], params["b2"]))
    h = lrelu(dense(h, params["w3"], params["b3"]))
    return dense(h, params["w4"], params["b4"])


if __name__ == "__main__":
    dimension = 4          # n_out = 48, hidden = 384
    batch = 2

    key = jax.random.PRNGKey(0)
    k_params, k_x = jax.random.split(key)
    params = init_params(k_params, dimension)
    kparams = prepare_params(params)   # one-time cast/pad, hoisted out of forward

    # Primary small-shape run (single grid step).
    x = jax.random.normal(k_x, (batch, 10), jnp.float32)
    out = jax.block_until_ready(complex_fc_generator_lpf_forward(x, kparams))
    ref = reference_forward(x, params)
    assert out.shape == (batch, dimension * 2 * 6)
    assert jnp.allclose(out, ref, atol=1e-2, rtol=1e-2), "mismatch vs reference"

    # Multi-grid-step path (3 steps) + batch / K padding.
    x2 = jax.random.normal(jax.random.PRNGKey(1), (20, 10), jnp.float32)
    out2 = jax.block_until_ready(
        complex_fc_generator_lpf_forward(x2, kparams, tile_b=8))
    ref2 = reference_forward(x2, params)
    assert out2.shape == (20, dimension * 2 * 6)
    assert jnp.allclose(out2, ref2, atol=1e-2, rtol=1e-2), "mismatch (tiled batch)"

    # Batch > 128: exercises the guaranteed >=2-tile megacore split (nb=2).
    x3 = jax.random.normal(jax.random.PRNGKey(2), (260, 10), jnp.float32)
    out3 = jax.block_until_ready(complex_fc_generator_lpf_forward(x3, kparams))
    ref3 = reference_forward(x3, params)
    assert out3.shape == (260, dimension * 2 * 6)
    assert jnp.allclose(out3, ref3, atol=1e-2, rtol=1e-2), "mismatch (megacore split)"

    print("KERNEL_OK")
</pallas_src>

<mosaic_0001>
module attributes {stable_mosaic.version = 11 : i64} {
  func.func @_mlp_kernel(%arg0: i32, %arg1: memref<8x16xf32, #tpu.memory_space<vmem>>, %arg2: memref<16x384xbf16, #tpu.memory_space<vmem>>, %arg3: memref<1x384xf32, #tpu.memory_space<vmem>>, %arg4: memref<384x384xbf16, #tpu.memory_space<vmem>>, %arg5: memref<1x384xf32, #tpu.memory_space<vmem>>, %arg6: memref<384x384xbf16, #tpu.memory_space<vmem>>, %arg7: memref<1x384xf32, #tpu.memory_space<vmem>>, %arg8: memref<384x128xbf16, #tpu.memory_space<vmem>>, %arg9: memref<1x128xf32, #tpu.memory_space<vmem>>, %arg10: memref<8x128xf32, #tpu.memory_space<vmem>>) attributes {dimension_semantics = [#tpu.dimension_semantics<parallel>], iteration_bounds = array<i64: 1>, scalar_prefetch = 0 : i64, scratch_operands = 0 : i64, tpu.core_type = #tpu.core_type<tc>, window_params = [{transform_indices = @transform_0, window_bounds = array<i64: 8, 16>}, {pipeline_mode = #tpu.pipeline_mode<synchronous>, transform_indices = @transform_1, window_bounds = array<i64: 16, 384>}, {pipeline_mode = #tpu.pipeline_mode<synchronous>, transform_indices = @transform_2, window_bounds = array<i64: 1, 384>}, {pipeline_mode = #tpu.pipeline_mode<synchronous>, transform_indices = @transform_3, window_bounds = array<i64: 384, 384>}, {pipeline_mode = #tpu.pipeline_mode<synchronous>, transform_indices = @transform_4, window_bounds = array<i64: 1, 384>}, {pipeline_mode = #tpu.pipeline_mode<synchronous>, transform_indices = @transform_5, window_bounds = array<i64: 384, 384>}, {pipeline_mode = #tpu.pipeline_mode<synchronous>, transform_indices = @transform_6, window_bounds = array<i64: 1, 384>}, {pipeline_mode = #tpu.pipeline_mode<synchronous>, transform_indices = @transform_7, window_bounds = array<i64: 384, 128>}, {pipeline_mode = #tpu.pipeline_mode<synchronous>, transform_indices = @transform_8, window_bounds = array<i64: 1, 128>}, {transform_indices = @transform_9, window_bounds = array<i64: 8, 128>}]} {
    %c0 = arith.constant 0 : index
    %c0_0 = arith.constant 0 : index
    %0 = vector.load %arg1[%c0, %c0_0] : memref<8x16xf32, #tpu.memory_space<vmem>>, vector<8x16xf32>
    %1 = arith.truncf %0 : vector<8x16xf32> to vector<8x16xbf16>
    %c0_1 = arith.constant 0 : index
    %c0_2 = arith.constant 0 : index
    %2 = vector.load %arg2[%c0_1, %c0_2] : memref<16x384xbf16, #tpu.memory_space<vmem>>, vector<16x384xbf16>
    %cst = arith.constant dense<0.000000e+00> : vector<8x384xf32>
    %3 = tpu.matmul %1, %2, %cst {dimension_numbers = #tpu.dot_dimension_numbers<[1], [0], [0], [1], [0, 0, 1, 1], [], []>} : vector<8x16xbf16>, vector<16x384xbf16>, vector<8x384xf32> -> vector<8x384xf32>
    %c0_3 = arith.constant 0 : index
    %c0_4 = arith.constant 0 : index
    %4 = vector.load %arg3[%c0_3, %c0_4] : memref<1x384xf32, #tpu.memory_space<vmem>>, vector<1x384xf32>
    %5 = vector.broadcast %4 : vector<1x384xf32> to vector<8x384xf32>
    %6 = arith.addf %3, %5 : vector<8x384xf32>
    %cst_5 = arith.constant 0.000000e+00 : f32
    %7 = vector.broadcast %cst_5 : f32 to vector<8x384xf32>
    %8 = arith.cmpf ogt, %6, %7 : vector<8x384xf32>
    %cst_6 = arith.constant 1.000000e-01 : f32
    %9 = vector.broadcast %cst_6 : f32 to vector<8x384xf32>
    %10 = arith.mulf %9, %6 : vector<8x384xf32>
    %11 = arith.select %8, %6, %10 : vector<8x384xi1>, vector<8x384xf32>
    %12 = arith.truncf %11 : vector<8x384xf32> to vector<8x384xbf16>
    %c0_7 = arith.constant 0 : index
    %c0_8 = arith.constant 0 : index
    %13 = vector.load %arg4[%c0_7, %c0_8] : memref<384x384xbf16, #tpu.memory_space<vmem>>, vector<384x384xbf16>
    %cst_9 = arith.constant dense<0.000000e+00> : vector<8x384xf32>
    %14 = tpu.matmul %12, %13, %cst_9 {dimension_numbers = #tpu.dot_dimension_numbers<[1], [0], [0], [1], [0, 0, 1, 1], [], []>} : vector<8x384xbf16>, vector<384x384xbf16>, vector<8x384xf32> -> vector<8x384xf32>
    %c0_10 = arith.constant 0 : index
    %c0_11 = arith.constant 0 : index
    %15 = vector.load %arg5[%c0_10, %c0_11] : memref<1x384xf32, #tpu.memory_space<vmem>>, vector<1x384xf32>
    %16 = vector.broadcast %15 : vector<1x384xf32> to vector<8x384xf32>
    %17 = arith.addf %14, %16 : vector<8x384xf32>
    %cst_12 = arith.constant 0.000000e+00 : f32
    %18 = vector.broadcast %cst_12 : f32 to vector<8x384xf32>
    %19 = arith.cmpf ogt, %17, %18 : vector<8x384xf32>
    %cst_13 = arith.constant 1.000000e-01 : f32
    %20 = vector.broadcast %cst_13 : f32 to vector<8x384xf32>
    %21 = arith.mulf %20, %17 : vector<8x384xf32>
    %22 = arith.select %19, %17, %21 : vector<8x384xi1>, vector<8x384xf32>
    %23 = arith.truncf %22 : vector<8x384xf32> to vector<8x384xbf16>
    %c0_14 = arith.constant 0 : index
    %c0_15 = arith.constant 0 : index
    %24 = vector.load %arg6[%c0_14, %c0_15] : memref<384x384xbf16, #tpu.memory_space<vmem>>, vector<384x384xbf16>
    %cst_16 = arith.constant dense<0.000000e+00> : vector<8x384xf32>
    %25 = tpu.matmul %23, %24, %cst_16 {dimension_numbers = #tpu.dot_dimension_numbers<[1], [0], [0], [1], [0, 0, 1, 1], [], []>} : vector<8x384xbf16>, vector<384x384xbf16>, vector<8x384xf32> -> vector<8x384xf32>
    %c0_17 = arith.constant 0 : index
    %c0_18 = arith.constant 0 : index
    %26 = vector.load %arg7[%c0_17, %c0_18] : memref<1x384xf32, #tpu.memory_space<vmem>>, vector<1x384xf32>
    %27 = vector.broadcast %26 : vector<1x384xf32> to vector<8x384xf32>
    %28 = arith.addf %25, %27 : vector<8x384xf32>
    %cst_19 = arith.constant 0.000000e+00 : f32
    %29 = vector.broadcast %cst_19 : f32 to vector<8x384xf32>
    %30 = arith.cmpf ogt, %28, %29 : vector<8x384xf32>
    %cst_20 = arith.constant 1.000000e-01 : f32
    %31 = vector.broadcast %cst_20 : f32 to vector<8x384xf32>
    %32 = arith.mulf %31, %28 : vector<8x384xf32>
    %33 = arith.select %30, %28, %32 : vector<8x384xi1>, vector<8x384xf32>
    %34 = arith.truncf %33 : vector<8x384xf32> to vector<8x384xbf16>
    %c0_21 = arith.constant 0 : index
    %c0_22 = arith.constant 0 : index
    %35 = vector.load %arg8[%c0_21, %c0_22] : memref<384x128xbf16, #tpu.memory_space<vmem>>, vector<384x128xbf16>
    %cst_23 = arith.constant dense<0.000000e+00> : vector<8x128xf32>
    %36 = tpu.matmul %34, %35, %cst_23 {dimension_numbers = #tpu.dot_dimension_numbers<[1], [0], [0], [1], [0, 0, 1, 1], [], []>} : vector<8x384xbf16>, vector<384x128xbf16>, vector<8x128xf32> -> vector<8x128xf32>
    %c0_24 = arith.constant 0 : index
    %c0_25 = arith.constant 0 : index
    %37 = vector.load %arg9[%c0_24, %c0_25] : memref<1x128xf32, #tpu.memory_space<vmem>>, vector<1x128xf32>
    %38 = vector.broadcast %37 : vector<1x128xf32> to vector<8x128xf32>
    %39 = arith.addf %36, %38 : vector<8x128xf32>
    %c0_26 = arith.constant 0 : index
    %c0_27 = arith.constant 0 : index
    %40 = vector.load %arg10[%c0_26, %c0_27] : memref<8x128xf32, #tpu.memory_space<vmem>>, vector<8x128xf32>
    tpu.vector_store %arg10[%c0_26, %c0_27], %39 {strides = array<i32>} : memref<8x128xf32, #tpu.memory_space<vmem>>, vector<8x128xf32>,
    return
  }
  func.func @transform_0(%arg0: i32) -> (i32, i32) {
    %c0_i32 = arith.constant 0 : i32
    %c0_i32_0 = arith.constant 0 : i32
    return %arg0, %c0_i32 : i32, i32
  }
  func.func @transform_1(%arg0: i32) -> (i32, i32) {
    %c0_i32 = arith.constant 0 : i32
    %c0_i32_0 = arith.constant 0 : i32
    %c0_i32_1 = arith.constant 0 : i32
    return %c0_i32, %c0_i32_0 : i32, i32
  }
  func.func @transform_2(%arg0: i32) -> (i32, i32) {
    %c0_i32 = arith.constant 0 : i32
    %c0_i32_0 = arith.constant 0 : i32
    %c0_i32_1 = arith.constant 0 : i32
    return %c0_i32, %c0_i32_0 : i32, i32
  }
  func.func @transform_3(%arg0: i32) -> (i32, i32) {
    %c0_i32 = arith.constant 0 : i32
    %c0_i32_0 = arith.constant 0 : i32
    %c0_i32_1 = arith.constant 0 : i32
    return %c0_i32, %c0_i32_0 : i32, i32
  }
  func.func @transform_4(%arg0: i32) -> (i32, i32) {
    %c0_i32 = arith.constant 0 : i32
    %c0_i32_0 = arith.constant 0 : i32
    %c0_i32_1 = arith.constant 0 : i32
    return %c0_i32, %c0_i32_0 : i32, i32
  }
  func.func @transform_5(%arg0: i32) -> (i32, i32) {
    %c0_i32 = arith.constant 0 : i32
    %c0_i32_0 = arith.constant 0 : i32
    %c0_i32_1 = arith.constant 0 : i32
    return %c0_i32, %c0_i32_0 : i32, i32
  }
  func.func @transform_6(%arg0: i32) -> (i32, i32) {
    %c0_i32 = arith.constant 0 : i32
    %c0_i32_0 = arith.constant 0 : i32
    %c0_i32_1 = arith.constant 0 : i32
    return %c0_i32, %c0_i32_0 : i32, i32
  }
  func.func @transform_7(%arg0: i32) -> (i32, i32) {
    %c0_i32 = arith.constant 0 : i32
    %c0_i32_0 = arith.constant 0 : i32
    %c0_i32_1 = arith.constant 0 : i32
    return %c0_i32, %c0_i32_0 : i32, i32
  }
  func.func @transform_8(%arg0: i32) -> (i32, i32) {
    %c0_i32 = arith.constant 0 : i32
    %c0_i32_0 = arith.constant 0 : i32
    %c0_i32_1 = arith.constant 0 : i32
    return %c0_i32, %c0_i32_0 : i32, i32
  }
  func.func @transform_9(%arg0: i32) -> (i32, i32) {
    %c0_i32 = arith.constant 0 : i32
    %c0_i32_0 = arith.constant 0 : i32
    return %arg0, %c0_i32 : i32, i32
  }
}

</mosaic_0001>

<llo_original>
// kernel: tpu_custom_call.1
$region0: #{tpu_custom_call.1}
  #allocation0 [shape = 'u32[]', space=smem, size = 0x4, offset = 0x4, fixed_abs, tag = 'smem constant byte address 0x4 - core index']
  #allocation1 [shape = 'u32[144,128]{1,0:T(1,128)}', space=vmem, size = 0x12000, scoped, tag = 'internal scratch']
  %s0 = inlined_call_operand.hbm [shape: f32[8,16], index: 0, kind: input, shape index: {}]
  %s1 = inlined_call_operand.hbm [shape: bf16[16,384], index: 1, kind: input, shape index: {}]
  %s2 = inlined_call_operand.vmem [shape: f32[1,384], index: 2, kind: input, shape index: {}]
  %s3 = inlined_call_operand.hbm [shape: bf16[384,384], index: 3, kind: input, shape index: {}]
  %s4 = inlined_call_operand.vmem [shape: f32[1,384], index: 4, kind: input, shape index: {}]
  %s5 = inlined_call_operand.hbm [shape: bf16[384,384], index: 5, kind: input, shape index: {}]
  %s6 = inlined_call_operand.vmem [shape: f32[1,384], index: 6, kind: input, shape index: {}]
  %s7 = inlined_call_operand.hbm [shape: bf16[384,128], index: 7, kind: input, shape index: {}]
  %s8 = inlined_call_operand.vmem [shape: f32[1,128], index: 8, kind: input, shape index: {}]
  %s9 = inlined_call_operand.hbm [shape: f32[8,128], index: 9, kind: output, shape index: {}]
  %s10 = sld [smem:[#allocation0]]
  $region66: #{tpu_custom_call.1} parent=0
    _
  %s12 = ssub.s32 1, %s10
  %s13 = scalar_select 0, %s12, %s10
  $region1: #{tpu_custom_call.1} parent=0
    #allocation2 [shape = 'u8[4096]{0}', space=vmem, size = 0x1000, scoped, tag = 'input window, operand 0, single buffered']
    #allocation3 [shape = 's32[1]{0}', space=sflag, size = 0x4, scoped, tag = 'scoped memory for tpu_custom_call.1']
    #allocation4 [shape = 's32[1]{0}', space=sflag, size = 0x4, scoped, tag = 'scoped memory for tpu_custom_call.1']
    #allocation5 [shape = 'u8[12288]{0}', space=vmem, size = 0x3000, scoped, tag = 'input window, operand 1, single buffered']
    #allocation6 [shape = 's32[1]{0}', space=sflag, size = 0x4, scoped, tag = 'scoped memory for tpu_custom_call.1']
    #allocation7 [shape = 'u8[294912]{0}', space=vmem, size = 0x48000, scoped, tag = 'input window, operand 3, single buffered']
    #allocation8 [shape = 'u8[294912]{0}', space=vmem, size = 0x48000, scoped, tag = 'input window, operand 5, single buffered']
    #allocation9 [shape = 's32[1]{0}', space=sflag, size = 0x4, scoped, tag = 'scoped memory for tpu_custom_call.1']
    #allocation10 [shape = 'u8[98304]{0}', space=vmem, size = 0x18000, scoped, tag = 'input window, operand 7, single buffered']
    #allocation11 [shape = 'u8[4096]{0}', space=vmem, size = 0x1000, scoped, tag = 'output window, operand 0, single buffered']
    %14 = vsyncpa [#allocation3], 0
    %15 = vsyncpa [#allocation6], 0
    %16 = vsyncpa [#allocation9], 0
    %17 = vsyncpa [#allocation4], 0
    // Predicated region
    $region2: #{tpu_custom_call.1} parent=1 // pred_check
      _
    $region3: #{tpu_custom_call.1} parent=1 // pred_check_branch
      %19 = sbr.rel (0) target = $region5
    $region4: #{tpu_custom_call.1} parent=1 // pred_region
      %s21 = ssub.s32 128, 128
      %22 = vsyncadd [#allocation3], %s21
      %s24 = sshll.u32 [#allocation2], 4
      %s25 = int_to_ptr.vmem [resolvable:$true] %s24
      %27 = dma.hbm_to_vmem [thread:$0]  %s0, 128, %s25, [#allocation3]
    $region5: #{tpu_custom_call.1} parent=1 // pred_fallthru
      _
    // Predicated region
    $region6: #{tpu_custom_call.1} parent=1 // pred_check
      _
    $region7: #{tpu_custom_call.1} parent=1 // pred_check_branch
      %29 = sbr.rel (0) target = $region9
    $region8: #{tpu_custom_call.1} parent=1 // pred_region
      %s31 = ssub.s32 384, 384
      %32 = vsyncadd [#allocation6], %s31
      %s33 = sshll.u32 [#allocation5], 4
      %s34 = int_to_ptr.vmem [resolvable:$true] %s33
      %39 = dma.hbm_to_vmem [thread:$0]  %s1, 384, %s34, [#allocation6], 192, 192, 12
    $region9: #{tpu_custom_call.1} parent=1 // pred_fallthru
      _
    // Predicated region
    $region10: #{tpu_custom_call.1} parent=1 // pred_check
      _
    $region11: #{tpu_custom_call.1} parent=1 // pred_check_branch
      %41 = sbr.rel (0) target = $region13
    $region12: #{tpu_custom_call.1} parent=1 // pred_region
      _
    $region13: #{tpu_custom_call.1} parent=1 // pred_fallthru
      _
    // Predicated region
    $region14: #{tpu_custom_call.1} parent=1 // pred_check
      _
    $region15: #{tpu_custom_call.1} parent=1 // pred_check_branch
      %43 = sbr.rel (0) target = $region17
    $region16: #{tpu_custom_call.1} parent=1 // pred_region
      %s45 = ssub.s32 9216, 9216
      %46 = vsyncadd [#allocation6], %s45
      %s47 = sshll.u32 [#allocation7], 4
      %s48 = int_to_ptr.vmem [resolvable:$true] %s47
      %53 = dma.hbm_to_vmem [thread:$0]  %s3, 9216, %s48, [#allocation6], 192, 192, 12
    $region17: #{tpu_custom_call.1} parent=1 // pred_fallthru
      _
    // Predicated region
    $region18: #{tpu_custom_call.1} parent=1 // pred_check
      _
    $region19: #{tpu_custom_call.1} parent=1 // pred_check_branch
      %55 = sbr.rel (0) target = $region21
    $region20: #{tpu_custom_call.1} parent=1 // pred_region
      _
    $region21: #{tpu_custom_call.1} parent=1 // pred_fallthru
      _
    // Predicated region
    $region22: #{tpu_custom_call.1} parent=1 // pred_check
      _
    $region23: #{tpu_custom_call.1} parent=1 // pred_check_branch
      %57 = sbr.rel (0) target = $region25
    $region24: #{tpu_custom_call.1} parent=1 // pred_region
      %s59 = ssub.s32 9216, 9216
      %60 = vsyncadd [#allocation9], %s59
      %s61 = sshll.u32 [#allocation8], 4
      %s62 = int_to_ptr.vmem [resolvable:$true] %s61
      %67 = dma.hbm_to_vmem [thread:$0]  %s5, 9216, %s62, [#allocation9], 192, 192, 12
    $region25: #{tpu_custom_call.1} parent=1 // pred_fallthru
      _
    // Predicated region
    $region26: #{tpu_custom_call.1} parent=1 // pred_check
      _
    $region27: #{tpu_custom_call.1} parent=1 // pred_check_branch
      %69 = sbr.rel (0) target = $region29
    $region28: #{tpu_custom_call.1} parent=1 // pred_region
      _
    $region29: #{tpu_custom_call.1} parent=1 // pred_fallthru
      _
    // Predicated region
    $region30: #{tpu_custom_call.1} parent=1 // pred_check
      _
    $region31: #{tpu_custom_call.1} parent=1 // pred_check_branch
      %71 = sbr.rel (0) target = $region33
    $region32: #{tpu_custom_call.1} parent=1 // pred_region
      %s73 = ssub.s32 3072, 3072
      %74 = vsyncadd [#allocation9], %s73
      %s75 = sshll.u32 [#allocation10], 4
      %s76 = int_to_ptr.vmem [resolvable:$true] %s75
      %81 = dma.hbm_to_vmem [thread:$0]  %s7, 3072, %s76, [#allocation9], 64, 64, 4
    $region33: #{tpu_custom_call.1} parent=1 // pred_fallthru
      _
    // Predicated region
    $region34: #{tpu_custom_call.1} parent=1 // pred_check
      _
    $region35: #{tpu_custom_call.1} parent=1 // pred_check_branch
      %83 = sbr.rel (0) target = $region37
    $region36: #{tpu_custom_call.1} parent=1 // pred_region
      _
    $region37: #{tpu_custom_call.1} parent=1 // pred_fallthru
      _
    // Predicated region
    $region38: #{tpu_custom_call.1} parent=1 // pred_check
      _
    $region39: #{tpu_custom_call.1} parent=1 // pred_check_branch
      %85 = sbr.rel (0) target = $region41
    $region40: #{tpu_custom_call.1} parent=1 // pred_region
      %86 = dma.done [#allocation3], 128
    $region41: #{tpu_custom_call.1} parent=1 // pred_fallthru
      _
    // Predicated region
    $region42: #{tpu_custom_call.1} parent=1 // pred_check
      _
    $region43: #{tpu_custom_call.1} parent=1 // pred_check_branch
      %88 = sbr.rel (0) target = $region45
    $region44: #{tpu_custom_call.1} parent=1 // pred_region
      %89 = dma.done [#allocation6], 384
    $region45: #{tpu_custom_call.1} parent=1 // pred_fallthru
      _
    // Predicated region
    $region46: #{tpu_custom_call.1} parent=1 // pred_check
      _
    $region47: #{tpu_custom_call.1} parent=1 // pred_check_branch
      %91 = sbr.rel (0) target = $region49
    $region48: #{tpu_custom_call.1} parent=1 // pred_region
      %92 = dma.done [#allocation6], 9216
    $region49: #{tpu_custom_call.1} parent=1 // pred_fallthru
      _
    // Predicated region
    $region50: #{tpu_custom_call.1} parent=1 // pred_check
      _
    $region51: #{tpu_custom_call.1} parent=1 // pred_check_branch
      %94 = sbr.rel (0) target = $region53
    $region52: #{tpu_custom_call.1} parent=1 // pred_region
      %95 = dma.done [#allocation9], 9216
    $region53: #{tpu_custom_call.1} parent=1 // pred_fallthru
      _
    // Predicated region
    $region54: #{tpu_custom_call.1} parent=1 // pred_check
      _
    $region55: #{tpu_custom_call.1} parent=1 // pred_check_branch
      %97 = sbr.rel (0) target = $region57
    $region56: #{tpu_custom_call.1} parent=1 // pred_region
      %98 = dma.done [#allocation9], 3072
    $region57: #{tpu_custom_call.1} parent=1 // pred_fallthru
      _
    %v100 = vld [vmem:[#allocation2] sm:$0xff]
    %v101 = vpack.c.bf16 %v100, %v100
    %v102 = vld [vmem:[#allocation5] sm:$0xff]
    %v103 = vld [vmem:[#allocation5 + $0x8] sm:$0xf]
    %v104 = vld [vmem:[#allocation5 + $0xc] sm:$0xff]
    %v105 = vld [vmem:[#allocation5 + $0x14] sm:$0xf]
    %v106 = vld [vmem:[%s2] sm:$0x7]
    %v108 = vlaneseq
    %v109 = vshrl.u32 %v108, 7
    %v110 = vsub.s32 0, %v109
    %v111 = vrot.slane %v106, %v110
    %v112 = vlaneseq
    %v113 = vshrl.u32 %v112, 7
    %v114 = vsub.s32 1, %v113
    %v115 = vrot.slane %v106, %v114
    %v116 = vlaneseq
    %v117 = vshrl.u32 %v116, 7
    %v118 = vsub.s32 2, %v117
    %v119 = vrot.slane %v106, %v118
    %v127 = vunpack.c.l.b16 %v102
    %v128 = vunpack.c.h.b16 %v102
    %v129 = vunpack.c.l.b16 %v103
    %v130 = vunpack.c.l.b16 %v104
    %v131 = vunpack.c.h.b16 %v104
    %v132 = vunpack.c.l.b16 %v105
    %v133 = vpack.c.b16 %v130, %v127
    %v134 = vpack.c.b16 %v131, %v128
    %v135 = vpack.c.b16 %v132, %v129
    %vm139 = vcmask 130048
    %v141 = vsel %vm139, %v101, 0
    %143 = vmatprep.subr.bf16.mxu0 0
    %144 = vmatpush1.bf16.msra.mxu0 0
    %145 = vmatprep.subr.bf16.mxu0 0
    %146 = vmatpush1.bf16.msra.mxu0 0
    %147 = vmatprep.subr.bf16.mxu0 0
    %148 = vmatpush1.bf16.msra.mxu0 0
    %149 = vmatprep.subr.bf16.mxu0 0
    %150 = vmatpush1.bf16.msra.mxu0 0
    %151 = vmatprep.subr.bf16.mxu0 0
    %152 = vmatpush1.bf16.msra.mxu0 0
    %153 = vmatprep.subr.bf16.mxu0 0
    %154 = vmatpush1.bf16.msra.mxu0 0
    %155 = vmatprep.subr.bf16.mxu0 0
    %156 = vmatpush1.bf16.msra.mxu0 0
    %157 = vmatprep.subr.bf16.mxu0 %v134
    %158 = vmatpush1.bf16.msra.mxu0 %v133
    %159 = vmatprep.subr.bf16.mxu0 0
    %160 = vmatpush2.bf16.msra.mxu0 0
    %161 = vmatprep.subr.bf16.mxu0 0
    %162 = vmatpush2.bf16.msra.mxu0 0
    %163 = vmatprep.subr.bf16.mxu0 0
    %164 = vmatpush2.bf16.msra.mxu0 0
    %165 = vmatprep.subr.bf16.mxu0 0
    %166 = vmatpush2.bf16.msra.mxu0 0
    %167 = vmatprep.subr.bf16.mxu0 0
    %168 = vmatpush2.bf16.msra.mxu0 0
    %169 = vmatprep.subr.bf16.mxu0 0
    %170 = vmatpush2.bf16.msra.mxu0 0
    %171 = vmatprep.subr.bf16.mxu0 0
    %172 = vmatpush2.bf16.msra.mxu0 0
    %173 = vmatprep.subr.bf16.mxu0 0
    %174 = vmatpush2.bf16.msra.mxu0 0
    %175 = vmatprep.mubr.bf16.mxu0 0
    %176 = vmatmul.mubr.bf16.gmra.mxu0 %v141
    %v177 = vpop.f32.mrf.mxu0
    %v178 = vadd.f32 %v111, %v177
    %v179 = vpop.f32.mrf.mxu0
    %v180 = vadd.f32 %v115, %v179
    %v181 = vpop.f32.mrf.mxu0
    %v182 = vpop.f32.mrf.mxu0
    %183 = vdwg.mxu0
    %184 = vmatprep.subr.bf16.mxu0 0
    %185 = vmatpush1.bf16.msra.mxu0 0
    %186 = vmatprep.subr.bf16.mxu0 0
    %187 = vmatpush1.bf16.msra.mxu0 0
    %188 = vmatprep.subr.bf16.mxu0 0
    %189 = vmatpush1.bf16.msra.mxu0 0
    %190 = vmatprep.subr.bf16.mxu0 0
    %191 = vmatpush1.bf16.msra.mxu0 0
    %192 = vmatprep.subr.bf16.mxu0 0
    %193 = vmatpush1.bf16.msra.mxu0 0
    %194 = vmatprep.subr.bf16.mxu0 0
    %195 = vmatpush1.bf16.msra.mxu0 0
    %196 = vmatprep.subr.bf16.mxu0 0
    %197 = vmatpush1.bf16.msra.mxu0 0
    %198 = vmatprep.subr.bf16.mxu0 0
    %199 = vmatpush1.bf16.msra.mxu0 %v135
    %200 = vmatprep.subr.bf16.mxu0 0
    %201 = vmatpush2.bf16.msra.mxu0 0
    %202 = vmatprep.subr.bf16.mxu0 0
    %203 = vmatpush2.bf16.msra.mxu0 0
    %204 = vmatprep.subr.bf16.mxu0 0
    %205 = vmatpush2.bf16.msra.mxu0 0
    %206 = vmatprep.subr.bf16.mxu0 0
    %207 = vmatpush2.bf16.msra.mxu0 0
    %208 = vmatprep.subr.bf16.mxu0 0
    %209 = vmatpush2.bf16.msra.mxu0 0
    %210 = vmatprep.subr.bf16.mxu0 0
    %211 = vmatpush2.bf16.msra.mxu0 0
    %212 = vmatprep.subr.bf16.mxu0 0
    %213 = vmatpush2.bf16.msra.mxu0 0
    %214 = vmatprep.subr.bf16.mxu0 0
    %215 = vmatpush2.bf16.msra.mxu0 0
    %216 = vmatprep.mubr.bf16.mxu0 0
    %217 = vmatmul.mubr.bf16.gmra.mxu0 %v141
    %v218 = vpop.f32.mrf.mxu0
    %v219 = vadd.f32 %v119, %v218
    %v220 = vpop.f32.mrf.mxu0
    %v221 = vpop.f32.mrf.mxu0
    %v222 = vpop.f32.mrf.mxu0
    %223 = vdwg.mxu0
    %vm224 = vcmp.gt.f32.partialorder %v178, 0.0
    %vm225 = vcmp.gt.f32.partialorder %v180, 0.0
    %vm226 = vcmp.gt.f32.partialorder %v219, 0.0
    %v227 = vmul.f32 %v178, 0.1
    %v228 = vmul.f32 %v180, 0.1
    %v229 = vmul.f32 %v219, 0.1
    %v230 = vsel %vm224, %v178, %v227
    %v231 = vsel %vm225, %v180, %v228
    %v232 = vsel %vm226, %v219, %v229
    %v233 = vpack.c.bf16 %v230, %v230
    %v234 = vpack.c.bf16 %v231, %v231
    %v235 = vpack.c.bf16 %v232, %v232
    %v236 = vld [vmem:[#allocation7] sm:$0xff]
    %v237 = vld [vmem:[#allocation7 + $0x8] sm:$0xf]
    %v238 = vld [vmem:[#allocation7 + $0xc] sm:$0xff]
    %v239 = vld [vmem:[#allocation7 + $0x14] sm:$0xf]
    %v240 = vld [vmem:[#allocation7 + $0x18] sm:$0xff]
    %v241 = vld [vmem:[#allocation7 + $0x20] sm:$0xf]
    %v242 = vld [vmem:[#allocation7 + $0x24] sm:$0xff]
    %v243 = vld [vmem:[#allocation7 + $0x2c] sm:$0xf]
    %v244 = vld [vmem:[#allocation7 + $0x30] sm:$0xff]
    %v245 = vld [vmem:[#allocation7 + $0x38] sm:$0xf]
    %v246 = vld [vmem:[#allocation7 + $0x3c] sm:$0xff]
    %v247 = vld [vmem:[#allocation7 + $0x44] sm:$0xf]
    %v248 = vld [vmem:[#allocation7 + $0x48] sm:$0xff]
    %v249 = vld [vmem:[#allocation7 + $0x50] sm:$0xf]
    %v250 = vld [vmem:[#allocation7 + $0x54] sm:$0xff]
    %v251 = vld [vmem:[#allocation7 + $0x5c] sm:$0xf]
    %v252 = vld [vmem:[#allocation7 + $0x60] sm:$0xff]
    %v253 = vld [vmem:[#allocation7 + $0x68] sm:$0xf]
    %v254 = vld [vmem:[#allocation7 + $0x6c] sm:$0xff]
    %v255 = vld [vmem:[#allocation7 + $0x74] sm:$0xf]
    %v256 = vld [vmem:[#allocation7 + $0x78] sm:$0xff]
    %v257 = vld [vmem:[#allocation7 + $0x80] sm:$0xf]
    %v258 = vld [vmem:[#allocation7 + $0x84] sm:$0xff]
    %v259 = vld [vmem:[#allocation7 + $0x8c] sm:$0xf]
    %v260 = vld [vmem:[#allocation7 + $0x90] sm:$0xff]
    %v261 = vld [vmem:[#allocation7 + $0x98] sm:$0xf]
    %v262 = vld [vmem:[#allocation7 + $0x9c] sm:$0xff]
    %v263 = vld [vmem:[#allocation7 + $0xa4] sm:$0xf]
    %v264 = vld [vmem:[#allocation7 + $0xa8] sm:$0xff]
    %v265 = vld [vmem:[#allocation7 + $0xb0] sm:$0xf]
    %v266 = vld [vmem:[#allocation7 + $0xb4] sm:$0xff]
    %v267 = vld [vmem:[#allocation7 + $0xbc] sm:$0xf]
    %v268 = vld [vmem:[#allocation7 + $0xc0] sm:$0xff]
    %v269 = vld [vmem:[#allocation7 + $0xc8] sm:$0xf]
    %v270 = vld [vmem:[#allocation7 + $0xcc] sm:$0xff]
    %v271 = vld [vmem:[#allocation7 + $0xd4] sm:$0xf]
    %v272 = vld [vmem:[#allocation7 + $0xd8] sm:$0xff]
    %v273 = vld [vmem:[#allocation7 + $0xe0] sm:$0xf]
    %v274 = vld [vmem:[#allocation7 + $0xe4] sm:$0xff]
    %v275 = vld [vmem:[#allocation7 + $0xec] sm:$0xf]
    %v276 = vld [vmem:[#allocation7 + $0xf0] sm:$0xff]
    %v277 = vld [vmem:[#allocation7 + $0xf8] sm:$0xf]
    %v278 = vld [vmem:[#allocation7 + $0xfc] sm:$0xff]
    %v279 = vld [vmem:[#allocation7 + $0x104] sm:$0xf]
    %v280 = vld [vmem:[#allocation7 + $0x108] sm:$0xff]
    %v281 = vld [vmem:[#allocation7 + $0x110] sm:$0xf]
    %v282 = vld [vmem:[#allocation7 + $0x114] sm:$0xff]
    %v283 = vld [vmem:[#allocation7 + $0x11c] sm:$0xf]
    %v284 = vld [vmem:[#allocation7 + $0x120] sm:$0xff]
    %v285 = vld [vmem:[#allocation7 + $0x128] sm:$0xf]
    %v286 = vld [vmem:[#allocation7 + $0x12c] sm:$0xff]
    %v287 = vld [vmem:[#allocation7 + $0x134] sm:$0xf]
    %v288 = vld [vmem:[#allocation7 + $0x138] sm:$0xff]
    %v289 = vld [vmem:[#allocation7 + $0x140] sm:$0xf]
    %v290 = vld [vmem:[#allocation7 + $0x144] sm:$0xff]
    %v291 = vld [vmem:[#allocation7 + $0x14c] sm:$0xf]
    %v292 = vld [vmem:[#allocation7 + $0x150] sm:$0xff]
    %v293 = vld [vmem:[#allocation7 + $0x158] sm:$0xf]
    %v294 = vld [vmem:[#allocation7 + $0x15c] sm:$0xff]
    %v295 = vld [vmem:[#allocation7 + $0x164] sm:$0xf]
    %v296 = vld [vmem:[#allocation7 + $0x168] sm:$0xff]
    %v297 = vld [vmem:[#allocation7 + $0x170] sm:$0xf]
    %v298 = vld [vmem:[#allocation7 + $0x174] sm:$0xff]
    %v299 = vld [vmem:[#allocation7 + $0x17c] sm:$0xf]
    %v300 = vld [vmem:[#allocation7 + $0x180] sm:$0xff]
    %v301 = vld [vmem:[#allocation7 + $0x188] sm:$0xf]
    %v302 = vld [vmem:[#allocation7 + $0x18c] sm:$0xff]
    %v303 = vld [vmem:[#allocation7 + $0x194] sm:$0xf]
    %v304 = vld [vmem:[#allocation7 + $0x198] sm:$0xff]
    %v305 = vld [vmem:[#allocation7 + $0x1a0] sm:$0xf]
    %v306 = vld [vmem:[#allocation7 + $0x1a4] sm:$0xff]
    %v307 = vld [vmem:[#allocation7 + $0x1ac] sm:$0xf]
    %v308 = vld [vmem:[#allocation7 + $0x1b0] sm:$0xff]
    %v309 = vld [vmem:[#allocation7 + $0x1b8] sm:$0xf]
    %v310 = vld [vmem:[#allocation7 + $0x1bc] sm:$0xff]
    %v311 = vld [vmem:[#allocation7 + $0x1c4] sm:$0xf]
    %v312 = vld [vmem:[#allocation7 + $0x1c8] sm:$0xff]
    %v313 = vld [vmem:[#allocation7 + $0x1d0] sm:$0xf]
    %v314 = vld [vmem:[#allocation7 + $0x1d4] sm:$0xff]
    %v315 = vld [vmem:[#allocation7 + $0x1dc] sm:$0xf]
    %v316 = vld [vmem:[#allocation7 + $0x1e0] sm:$0xff]
    %v317 = vld [vmem:[#allocation7 + $0x1e8] sm:$0xf]
    %v318 = vld [vmem:[#allocation7 + $0x1ec] sm:$0xff]
    %v319 = vld [vmem:[#allocation7 + $0x1f4] sm:$0xf]
    %v320 = vld [vmem:[#allocation7 + $0x1f8] sm:$0xff]
    %v321 = vld [vmem:[#allocation7 + $0x200] sm:$0xf]
    %v322 = vld [vmem:[#allocation7 + $0x204] sm:$0xff]
    %v323 = vld [vmem:[#allocation7 + $0x20c] sm:$0xf]
    %v324 = vld [vmem:[#allocation7 + $0x210] sm:$0xff]
    %v325 = vld [vmem:[#allocation7 + $0x218] sm:$0xf]
    %v326 = vld [vmem:[#allocation7 + $0x21c] sm:$0xff]
    %v327 = vld [vmem:[#allocation7 + $0x224] sm:$0xf]
    %v328 = vld [vmem:[#allocation7 + $0x228] sm:$0xff]
    %v329 = vld [vmem:[#allocation7 + $0x230] sm:$0xf]
    %v330 = vld [vmem:[#allocation7 + $0x234] sm:$0xff]
    %v331 = vld [vmem:[#allocation7 + $0x23c] sm:$0xf]
    %v332 = vld [vmem:[%s4] sm:$0x7]
    %v334 = vlaneseq
    %v335 = vshrl.u32 %v334, 7
    %v336 = vsub.s32 0, %v335
    %v337 = vrot.slane %v332, %v336
    %v338 = vlaneseq
    %v339 = vshrl.u32 %v338, 7
    %v340 = vsub.s32 1, %v339
    %v341 = vrot.slane %v332, %v340
    %v342 = vlaneseq
    %v343 = vshrl.u32 %v342, 7
    %v344 = vsub.s32 2, %v343
    %v345 = vrot.slane %v332, %v344
    %v445 = vunpack.c.l.b16 %v236
    %v446 = vunpack.c.h.b16 %v236
    %v447 = vunpack.c.l.b16 %v237
    %v448 = vunpack.c.l.b16 %v238
    %v449 = vunpack.c.h.b16 %v238
    %v450 = vunpack.c.l.b16 %v239
    %v451 = vunpack.c.l.b16 %v240
    %v452 = vunpack.c.h.b16 %v240
    %v453 = vunpack.c.l.b16 %v241
    %v454 = vunpack.c.l.b16 %v242
    %v455 = vunpack.c.h.b16 %v242
    %v456 = vunpack.c.l.b16 %v243
    %v457 = vunpack.c.l.b16 %v244
    %v458 = vunpack.c.h.b16 %v244
    %v459 = vunpack.c.l.b16 %v245
    %v460 = vunpack.c.l.b16 %v246
    %v461 = vunpack.c.h.b16 %v246
    %v462 = vunpack.c.l.b16 %v247
    %v463 = vunpack.c.l.b16 %v248
    %v464 = vunpack.c.h.b16 %v248
    %v465 = vunpack.c.l.b16 %v249
    %v466 = vunpack.c.l.b16 %v250
    %v467 = vunpack.c.h.b16 %v250
    %v468 = vunpack.c.l.b16 %v251
    %v469 = vunpack.c.l.b16 %v252
    %v470 = vunpack.c.h.b16 %v252
    %v471 = vunpack.c.l.b16 %v253
    %v472 = vunpack.c.l.b16 %v254
    %v473 = vunpack.c.h.b16 %v254
    %v474 = vunpack.c.l.b16 %v255
    %v475 = vunpack.c.l.b16 %v256
    %v476 = vunpack.c.h.b16 %v256
    %v477 = vunpack.c.l.b16 %v257
    %v478 = vunpack.c.l.b16 %v258
    %v479 = vunpack.c.h.b16 %v258
    %v480 = vunpack.c.l.b16 %v259
    %v481 = vunpack.c.l.b16 %v260
    %v482 = vunpack.c.h.b16 %v260
    %v483 = vunpack.c.l.b16 %v261
    %v484 = vunpack.c.l.b16 %v262
    %v485 = vunpack.c.h.b16 %v262
    %v486 = vunpack.c.l.b16 %v263
    %v487 = vunpack.c.l.b16 %v264
    %v488 = vunpack.c.h.b16 %v264
    %v489 = vunpack.c.l.b16 %v265
    %v490 = vunpack.c.l.b16 %v266
    %v491 = vunpack.c.h.b16 %v266
    %v492 = vunpack.c.l.b16 %v267
    %v493 = vunpack.c.l.b16 %v268
    %v494 = vunpack.c.h.b16 %v268
    %v495 = vunpack.c.l.b16 %v269
    %v496 = vunpack.c.l.b16 %v270
    %v497 = vunpack.c.h.b16 %v270
    %v498 = vunpack.c.l.b16 %v271
    %v499 = vunpack.c.l.b16 %v272
    %v500 = vunpack.c.h.b16 %v272
    %v501 = vunpack.c.l.b16 %v273
    %v502 = vunpack.c.l.b16 %v274
    %v503 = vunpack.c.h.b16 %v274
    %v504 = vunpack.c.l.b16 %v275
    %v505 = vunpack.c.l.b16 %v276
    %v506 = vunpack.c.h.b16 %v276
    %v507 = vunpack.c.l.b16 %v277
    %v508 = vunpack.c.l.b16 %v278
    %v509 = vunpack.c.h.b16 %v278
    %v510 = vunpack.c.l.b16 %v279
    %v511 = vunpack.c.l.b16 %v280
    %v512 = vunpack.c.h.b16 %v280
    %v513 = vunpack.c.l.b16 %v281
    %v514 = vunpack.c.l.b16 %v282
    %v515 = vunpack.c.h.b16 %v282
    %v516 = vunpack.c.l.b16 %v283
    %v517 = vunpack.c.l.b16 %v284
    %v518 = vunpack.c.h.b16 %v284
    %v519 = vunpack.c.l.b16 %v285
    %v520 = vunpack.c.l.b16 %v286
    %v521 = vunpack.c.h.b16 %v286
    %v522 = vunpack.c.l.b16 %v287
    %v523 = vunpack.c.l.b16 %v288
    %v524 = vunpack.c.h.b16 %v288
    %v525 = vunpack.c.l.b16 %v289
    %v526 = vunpack.c.l.b16 %v290
    %v527 = vunpack.c.h.b16 %v290
    %v528 = vunpack.c.l.b16 %v291
    %v529 = vunpack.c.l.b16 %v292
    %v530 = vunpack.c.h.b16 %v292
    %v531 = vunpack.c.l.b16 %v293
    %v532 = vunpack.c.l.b16 %v294
    %v533 = vunpack.c.h.b16 %v294
    %v534 = vunpack.c.l.b16 %v295
    %v535 = vunpack.c.l.b16 %v296
    %v536 = vunpack.c.h.b16 %v296
    %v537 = vunpack.c.l.b16 %v297
    %v538 = vunpack.c.l.b16 %v298
    %v539 = vunpack.c.h.b16 %v298
    %v540 = vunpack.c.l.b16 %v299
    %v541 = vunpack.c.l.b16 %v300
    %v542 = vunpack.c.h.b16 %v300
    %v543 = vunpack.c.l.b16 %v301
    %v544 = vunpack.c.l.b16 %v302
    %v545 = vunpack.c.h.b16 %v302
    %v546 = vunpack.c.l.b16 %v303
    %v547 = vunpack.c.l.b16 %v304
    %v548 = vunpack.c.h.b16 %v304
    %v549 = vunpack.c.l.b16 %v305
    %v550 = vunpack.c.l.b16 %v306
    %v551 = vunpack.c.h.b16 %v306
    %v552 = vunpack.c.l.b16 %v307
    %v553 = vunpack.c.l.b16 %v308
    %v554 = vunpack.c.h.b16 %v308
    %v555 = vunpack.c.l.b16 %v309
    %v556 = vunpack.c.l.b16 %v310
    %v557 = vunpack.c.h.b16 %v310
    %v558 = vunpack.c.l.b16 %v311
    %v559 = vunpack.c.l.b16 %v312
    %v560 = vunpack.c.h.b16 %v312
    %v561 = vunpack.c.l.b16 %v313
    %v562 = vunpack.c.l.b16 %v314
    %v563 = vunpack.c.h.b16 %v314
    %v564 = vunpack.c.l.b16 %v315
    %v565 = vunpack.c.l.b16 %v316
    %v566 = vunpack.c.h.b16 %v316
    %v567 = vunpack.c.l.b16 %v317
    %v568 = vunpack.c.l.b16 %v318
    %v569 = vunpack.c.h.b16 %v318
    %v570 = vunpack.c.l.b16 %v319
    %v571 = vunpack.c.l.b16 %v320
    %v572 = vunpack.c.h.b16 %v320
    %v573 = vunpack.c.l.b16 %v321
    %v574 = vunpack.c.l.b16 %v322
    %v575 = vunpack.c.h.b16 %v322
    %v576 = vunpack.c.l.b16 %v323
    %v577 = vunpack.c.l.b16 %v324
    %v578 = vunpack.c.h.b16 %v324
    %v579 = vunpack.c.l.b16 %v325
    %v580 = vunpack.c.l.b16 %v326
    %v581 = vunpack.c.h.b16 %v326
    %v582 = vunpack.c.l.b16 %v327
    %v583 = vunpack.c.l.b16 %v328
    %v584 = vunpack.c.h.b16 %v328
    %v585 = vunpack.c.l.b16 %v329
    %v586 = vunpack.c.l.b16 %v330
    %v587 = vunpack.c.h.b16 %v330
    %v588 = vunpack.c.l.b16 %v331
    %v589 = vpack.c.b16 %v448, %v445
    %v590 = vpack.c.b16 %v449, %v446
    %v591 = vpack.c.b16 %v450, %v447
    %v592 = vpack.c.b16 %v454, %v451
    %v593 = vpack.c.b16 %v455, %v452
    %v594 = vpack.c.b16 %v456, %v453
    %v595 = vpack.c.b16 %v460, %v457
    %v596 = vpack.c.b16 %v461, %v458
    %v597 = vpack.c.b16 %v462, %v459
    %v598 = vpack.c.b16 %v466, %v463
    %v599 = vpack.c.b16 %v467, %v464
    %v600 = vpack.c.b16 %v468, %v465
    %v601 = vpack.c.b16 %v472, %v469
    %v602 = vpack.c.b16 %v473, %v470
    %v603 = vpack.c.b16 %v474, %v471
    %v604 = vpack.c.b16 %v478, %v475
    %v605 = vpack.c.b16 %v479, %v476
    %v606 = vpack.c.b16 %v480, %v477
    %v607 = vpack.c.b16 %v484, %v481
    %v608 = vpack.c.b16 %v485, %v482
    %v609 = vpack.c.b16 %v486, %v483
    %v610 = vpack.c.b16 %v490, %v487
    %v611 = vpack.c.b16 %v491, %v488
    %v612 = vpack.c.b16 %v492, %v489
    %v613 = vpack.c.b16 %v496, %v493
    %v614 = vpack.c.b16 %v497, %v494
    %v615 = vpack.c.b16 %v498, %v495
    %v616 = vpack.c.b16 %v502, %v499
    %v617 = vpack.c.b16 %v503, %v500
    %v618 = vpack.c.b16 %v504, %v501
    %v619 = vpack.c.b16 %v508, %v505
    %v620 = vpack.c.b16 %v509, %v506
    %v621 = vpack.c.b16 %v510, %v507
    %v622 = vpack.c.b16 %v514, %v511
    %v623 = vpack.c.b16 %v515, %v512
    %v624 = vpack.c.b16 %v516, %v513
    %v625 = vpack.c.b16 %v520, %v517
    %v626 = vpack.c.b16 %v521, %v518
    %v627 = vpack.c.b16 %v522, %v519
    %v628 = vpack.c.b16 %v526, %v523
    %v629 = vpack.c.b16 %v527, %v524
    %v630 = vpack.c.b16 %v528, %v525
    %v631 = vpack.c.b16 %v532, %v529
    %v632 = vpack.c.b16 %v533, %v530
    %v633 = vpack.c.b16 %v534, %v531
    %v634 = vpack.c.b16 %v538, %v535
    %v635 = vpack.c.b16 %v539, %v536
    %v636 = vpack.c.b16 %v540, %v537
    %v637 = vpack.c.b16 %v544, %v541
    %v638 = vpack.c.b16 %v545, %v542
    %v639 = vpack.c.b16 %v546, %v543
    %v640 = vpack.c.b16 %v550, %v547
    %v641 = vpack.c.b16 %v551, %v548
    %v642 = vpack.c.b16 %v552, %v549
    %v643 = vpack.c.b16 %v556, %v553
    %v644 = vpack.c.b16 %v557, %v554
    %v645 = vpack.c.b16 %v558, %v555
    %v646 = vpack.c.b16 %v562, %v559
    %v647 = vpack.c.b16 %v563, %v560
    %v648 = vpack.c.b16 %v564, %v561
    %v649 = vpack.c.b16 %v568, %v565
    %v650 = vpack.c.b16 %v569, %v566
    %v651 = vpack.c.b16 %v570, %v567
    %v652 = vpack.c.b16 %v574, %v571
    %v653 = vpack.c.b16 %v575, %v572
    %v654 = vpack.c.b16 %v576, %v573
    %v655 = vpack.c.b16 %v580, %v577
    %v656 = vpack.c.b16 %v581, %v578
    %v657 = vpack.c.b16 %v582, %v579
    %v658 = vpack.c.b16 %v586, %v583
    %v659 = vpack.c.b16 %v587, %v584
    %v660 = vpack.c.b16 %v588, %v585
    %733 = vmatprep.subr.bf16.mxu0 %v611
    %734 = vmatpush1.bf16.msra.mxu0 %v610
    %735 = vmatprep.subr.bf16.mxu0 %v608
    %736 = vmatpush1.bf16.msra.mxu0 %v607
    %737 = vmatprep.subr.bf16.mxu0 %v605
    %738 = vmatpush1.bf16.msra.mxu0 %v604
    %739 = vmatprep.subr.bf16.mxu0 %v602
    %740 = vmatpush1.bf16.msra.mxu0 %v601
    %741 = vmatprep.subr.bf16.mxu0 %v599
    %742 = vmatpush1.bf16.msra.mxu0 %v598
    %743 = vmatprep.subr.bf16.mxu0 %v596
    %744 = vmatpush1.bf16.msra.mxu0 %v595
    %745 = vmatprep.subr.bf16.mxu0 %v593
    %746 = vmatpush1.bf16.msra.mxu0 %v592
    %747 = vmatprep.subr.bf16.mxu0 %v590
    %748 = vmatpush1.bf16.msra.mxu0 %v589
    %749 = vmatprep.subr.bf16.mxu0 %v635
    %750 = vmatpush2.bf16.msra.mxu0 %v634
    %751 = vmatprep.subr.bf16.mxu0 %v632
    %752 = vmatpush2.bf16.msra.mxu0 %v631
    %753 = vmatprep.subr.bf16.mxu0 %v629
    %754 = vmatpush2.bf16.msra.mxu0 %v628
    %755 = vmatprep.subr.bf16.mxu0 %v626
    %756 = vmatpush2.bf16.msra.mxu0 %v625
    %757 = vmatprep.subr.bf16.mxu0 %v623
    %758 = vmatpush2.bf16.msra.mxu0 %v622
    %759 = vmatprep.subr.bf16.mxu0 %v620
    %760 = vmatpush2.bf16.msra.mxu0 %v619
    %761 = vmatprep.subr.bf16.mxu0 %v617
    %762 = vmatpush2.bf16.msra.mxu0 %v616
    %763 = vmatprep.subr.bf16.mxu0 %v614
    %764 = vmatpush2.bf16.msra.mxu0 %v613
    %765 = vmatprep.mubr.bf16.mxu0 %v234
    %766 = vmatmul.mubr.bf16.gmra.mxu0 %v233
    %v767 = vpop.f32.mrf.mxu0
    %v768 = vadd.f32 %v337, %v767
    %v769 = vpop.f32.mrf.mxu0
    %v770 = vadd.f32 %v341, %v769
    %v771 = vpop.f32.mrf.mxu0
    %v772 = vpop.f32.mrf.mxu0
    %773 = vdwg.mxu0
    %774 = vmatprep.subr.bf16.mxu0 %v659
    %775 = vmatpush1.bf16.msra.mxu0 %v658
    %776 = vmatprep.subr.bf16.mxu0 %v656
    %777 = vmatpush1.bf16.msra.mxu0 %v655
    %778 = vmatprep.subr.bf16.mxu0 %v653
    %779 = vmatpush1.bf16.msra.mxu0 %v652
    %780 = vmatprep.subr.bf16.mxu0 %v650
    %781 = vmatpush1.bf16.msra.mxu0 %v649
    %782 = vmatprep.subr.bf16.mxu0 %v647
    %783 = vmatpush1.bf16.msra.mxu0 %v646
    %784 = vmatprep.subr.bf16.mxu0 %v644
    %785 = vmatpush1.bf16.msra.mxu0 %v643
    %786 = vmatprep.subr.bf16.mxu0 %v641
    %787 = vmatpush1.bf16.msra.mxu0 %v640
    %788 = vmatprep.subr.bf16.mxu0 %v638
    %789 = vmatpush1.bf16.msra.mxu0 %v637
    %790 = vmatprep.subr.bf16.mxu0 0
    %791 = vmatpush2.bf16.msra.mxu0 0
    %792 = vmatprep.subr.bf16.mxu0 0
    %793 = vmatpush2.bf16.msra.mxu0 0
    %794 = vmatprep.subr.bf16.mxu0 0
    %795 = vmatpush2.bf16.msra.mxu0 0
    %796 = vmatprep.subr.bf16.mxu0 0
    %797 = vmatpush2.bf16.msra.mxu0 0
    %798 = vmatprep.subr.bf16.mxu0 0
    %799 = vmatpush2.bf16.msra.mxu0 0
    %800 = vmatprep.subr.bf16.mxu0 0
    %801 = vmatpush2.bf16.msra.mxu0 0
    %802 = vmatprep.subr.bf16.mxu0 0
    %803 = vmatpush2.bf16.msra.mxu0 0
    %804 = vmatprep.subr.bf16.mxu0 0
    %805 = vmatpush2.bf16.msra.mxu0 0
    %806 = vmatprep.mubr.bf16.mxu0 0
    %807 = vmatmul.mubr.bf16.gmra.mxu0 %v235
    %v808 = vpop.f32.mrf.mxu0
    %v809 = vadd.f32 %v768, %v808
    %v810 = vpop.f32.mrf.mxu0
    %v811 = vadd.f32 %v770, %v810
    %v812 = vpop.f32.mrf.mxu0
    %v813 = vpop.f32.mrf.mxu0
    %814 = vdwg.mxu0
    %815 = vmatprep.subr.bf16.mxu0 0
    %816 = vmatpush1.bf16.msra.mxu0 %v612
    %817 = vmatprep.subr.bf16.mxu0 0
    %818 = vmatpush1.bf16.msra.mxu0 %v609
    %819 = vmatprep.subr.bf16.mxu0 0
    %820 = vmatpush1.bf16.msra.mxu0 %v606
    %821 = vmatprep.subr.bf16.mxu0 0
    %822 = vmatpush1.bf16.msra.mxu0 %v603
    %823 = vmatprep.subr.bf16.mxu0 0
    %824 = vmatpush1.bf16.msra.mxu0 %v600
    %825 = vmatprep.subr.bf16.mxu0 0
    %826 = vmatpush1.bf16.msra.mxu0 %v597
    %827 = vmatprep.subr.bf16.mxu0 0
    %828 = vmatpush1.bf16.msra.mxu0 %v594
    %829 = vmatprep.subr.bf16.mxu0 0
    %830 = vmatpush1.bf16.msra.mxu0 %v591
    %831 = vmatprep.subr.bf16.mxu0 0
    %832 = vmatpush2.bf16.msra.mxu0 %v636
    %833 = vmatprep.subr.bf16.mxu0 0
    %834 = vmatpush2.bf16.msra.mxu0 %v633
    %835 = vmatprep.subr.bf16.mxu0 0
    %836 = vmatpush2.bf16.msra.mxu0 %v630
    %837 = vmatprep.subr.bf16.mxu0 0
    %838 = vmatpush2.bf16.msra.mxu0 %v627
    %839 = vmatprep.subr.bf16.mxu0 0
    %840 = vmatpush2.bf16.msra.mxu0 %v624
    %841 = vmatprep.subr.bf16.mxu0 0
    %842 = vmatpush2.bf16.msra.mxu0 %v621
    %843 = vmatprep.subr.bf16.mxu0 0
    %844 = vmatpush2.bf16.msra.mxu0 %v618
    %845 = vmatprep.subr.bf16.mxu0 0
    %846 = vmatpush2.bf16.msra.mxu0 %v615
    %847 = vmatprep.mubr.bf16.mxu0 %v234
    %848 = vmatmul.mubr.bf16.gmra.mxu0 %v233
    %v849 = vpop.f32.mrf.mxu0
    %v850 = vadd.f32 %v345, %v849
    %v851 = vpop.f32.mrf.mxu0
    %v852 = vpop.f32.mrf.mxu0
    %v853 = vpop.f32.mrf.mxu0
    %854 = vdwg.mxu0
    %855 = vmatprep.subr.bf16.mxu0 0
    %856 = vmatpush1.bf16.msra.mxu0 %v660
    %857 = vmatprep.subr.bf16.mxu0 0
    %858 = vmatpush1.bf16.msra.mxu0 %v657
    %859 = vmatprep.subr.bf16.mxu0 0
    %860 = vmatpush1.bf16.msra.mxu0 %v654
    %861 = vmatprep.subr.bf16.mxu0 0
    %862 = vmatpush1.bf16.msra.mxu0 %v651
    %863 = vmatprep.subr.bf16.mxu0 0
    %864 = vmatpush1.bf16.msra.mxu0 %v648
    %865 = vmatprep.subr.bf16.mxu0 0
    %866 = vmatpush1.bf16.msra.mxu0 %v645
    %867 = vmatprep.subr.bf16.mxu0 0
    %868 = vmatpush1.bf16.msra.mxu0 %v642
    %869 = vmatprep.subr.bf16.mxu0 0
    %870 = vmatpush1.bf16.msra.mxu0 %v639
    %871 = vmatprep.subr.bf16.mxu0 0
    %872 = vmatpush2.bf16.msra.mxu0 0
    %873 = vmatprep.subr.bf16.mxu0 0
    %874 = vmatpush2.bf16.msra.mxu0 0
    %875 = vmatprep.subr.bf16.mxu0 0
    %876 = vmatpush2.bf16.msra.mxu0 0
    %877 = vmatprep.subr.bf16.mxu0 0
    %878 = vmatpush2.bf16.msra.mxu0 0
    %879 = vmatprep.subr.bf16.mxu0 0
    %880 = vmatpush2.bf16.msra.mxu0 0
    %881 = vmatprep.subr.bf16.mxu0 0
    %882 = vmatpush2.bf16.msra.mxu0 0
    %883 = vmatprep.subr.bf16.mxu0 0
    %884 = vmatpush2.bf16.msra.mxu0 0
    %885 = vmatprep.subr.bf16.mxu0 0
    %886 = vmatpush2.bf16.msra.mxu0 0
    %887 = vmatprep.mubr.bf16.mxu0 0
    %888 = vmatmul.mubr.bf16.gmra.mxu0 %v235
    %v889 = vpop.f32.mrf.mxu0
    %v890 = vadd.f32 %v850, %v889
    %v891 = vpop.f32.mrf.mxu0
    %v892 = vpop.f32.mrf.mxu0
    %v893 = vpop.f32.mrf.mxu0
    %894 = vdwg.mxu0
    %vm895 = vcmp.gt.f32.partialorder %v809, 0.0
    %vm896 = vcmp.gt.f32.partialorder %v811, 0.0
    %vm897 = vcmp.gt.f32.partialorder %v890, 0.0
    %v898 = vmul.f32 %v809, 0.1
    %v899 = vmul.f32 %v811, 0.1
    %v900 = vmul.f32 %v890, 0.1
    %v901 = vsel %vm895, %v809, %v898
    %v902 = vsel %vm896, %v811, %v899
    %v903 = vsel %vm897, %v890, %v900
    %v904 = vpack.c.bf16 %v901, %v901
    %v905 = vpack.c.bf16 %v902, %v902
    %v906 = vpack.c.bf16 %v903, %v903
    %v907 = vld [vmem:[#allocation8] sm:$0xff]
    %v908 = vld [vmem:[#allocation8 + $0x8] sm:$0xf]
    %v909 = vld [vmem:[#allocation8 + $0xc] sm:$0xff]
    %v910 = vld [vmem:[#allocation8 + $0x14] sm:$0xf]
    %v911 = vld [vmem:[#allocation8 + $0x18] sm:$0xff]
    %v912 = vld [vmem:[#allocation8 + $0x20] sm:$0xf]
    %v913 = vld [vmem:[#allocation8 + $0x24] sm:$0xff]
    %v914 = vld [vmem:[#allocation8 + $0x2c] sm:$0xf]
    %v915 = vld [vmem:[#allocation8 + $0x30] sm:$0xff]
    %v916 = vld [vmem:[#allocation8 + $0x38] sm:$0xf]
    %v917 = vld [vmem:[#allocation8 + $0x3c] sm:$0xff]
    %v918 = vld [vmem:[#allocation8 + $0x44] sm:$0xf]
    %v919 = vld [vmem:[#allocation8 + $0x48] sm:$0xff]
    %v920 = vld [vmem:[#allocation8 + $0x50] sm:$0xf]
    %v921 = vld [vmem:[#allocation8 + $0x54] sm:$0xff]
    %v922 = vld [vmem:[#allocation8 + $0x5c] sm:$0xf]
    %v923 = vld [vmem:[#allocation8 + $0x60] sm:$0xff]
    %v924 = vld [vmem:[#allocation8 + $0x68] sm:$0xf]
    %v925 = vld [vmem:[#allocation8 + $0x6c] sm:$0xff]
    %v926 = vld [vmem:[#allocation8 + $0x74] sm:$0xf]
    %v927 = vld [vmem:[#allocation8 + $0x78] sm:$0xff]
    %v928 = vld [vmem:[#allocation8 + $0x80] sm:$0xf]
    %v929 = vld [vmem:[#allocation8 + $0x84] sm:$0xff]
    %v930 = vld [vmem:[#allocation8 + $0x8c] sm:$0xf]
    %v931 = vld [vmem:[#allocation8 + $0x90] sm:$0xff]
    %v932 = vld [vmem:[#allocation8 + $0x98] sm:$0xf]
    %v933 = vld [vmem:[#allocation8 + $0x9c] sm:$0xff]
    %v934 = vld [vmem:[#allocation8 + $0xa4] sm:$0xf]
    %v935 = vld [vmem:[#allocation8 + $0xa8] sm:$0xff]
    %v936 = vld [vmem:[#allocation8 + $0xb0] sm:$0xf]
    %v937 = vld [vmem:[#allocation8 + $0xb4] sm:$0xff]
    %v938 = vld [vmem:[#allocation8 + $0xbc] sm:$0xf]
    %v939 = vld [vmem:[#allocation8 + $0xc0] sm:$0xff]
    %v940 = vld [vmem:[#allocation8 + $0xc8] sm:$0xf]
    %v941 = vld [vmem:[#allocation8 + $0xcc] sm:$0xff]
    %v942 = vld [vmem:[#allocation8 + $0xd4] sm:$0xf]
    %v943 = vld [vmem:[#allocation8 + $0xd8] sm:$0xff]
    %v944 = vld [vmem:[#allocation8 + $0xe0] sm:$0xf]
    %v945 = vld [vmem:[#allocation8 + $0xe4] sm:$0xff]
    %v946 = vld [vmem:[#allocation8 + $0xec] sm:$0xf]
    %v947 = vld [vmem:[#allocation8 + $0xf0] sm:$0xff]
    %v948 = vld [vmem:[#allocation8 + $0xf8] sm:$0xf]
    %v949 = vld [vmem:[#allocation8 + $0xfc] sm:$0xff]
    %v950 = vld [vmem:[#allocation8 + $0x104] sm:$0xf]
    %v951 = vld [vmem:[#allocation8 + $0x108] sm:$0xff]
    %v952 = vld [vmem:[#allocation8 + $0x110] sm:$0xf]
    %v953 = vld [vmem:[#allocation8 + $0x114] sm:$0xff]
    %v954 = vld [vmem:[#allocation8 + $0x11c] sm:$0xf]
    %v955 = vld [vmem:[#allocation8 + $0x120] sm:$0xff]
    %v956 = vld [vmem:[#allocation8 + $0x128] sm:$0xf]
    %v957 = vld [vmem:[#allocation8 + $0x12c] sm:$0xff]
    %v958 = vld [vmem:[#allocation8 + $0x134] sm:$0xf]
    %v959 = vld [vmem:[#allocation8 + $0x138] sm:$0xff]
    %v960 = vld [vmem:[#allocation8 + $0x140] sm:$0xf]
    %v961 = vld [vmem:[#allocation8 + $0x144] sm:$0xff]
    %v962 = vld [vmem:[#allocation8 + $0x14c] sm:$0xf]
    %v963 = vld [vmem:[#allocation8 + $0x150] sm:$0xff]
    %v964 = vld [vmem:[#allocation8 + $0x158] sm:$0xf]
    %v965 = vld [vmem:[#allocation8 + $0x15c] sm:$0xff]
    %v966 = vld [vmem:[#allocation8 + $0x164] sm:$0xf]
    %v967 = vld [vmem:[#allocation8 + $0x168] sm:$0xff]
    %v968 = vld [vmem:[#allocation8 + $0x170] sm:$0xf]
    %v969 = vld [vmem:[#allocation8 + $0x174] sm:$0xff]
    %v970 = vld [vmem:[#allocation8 + $0x17c] sm:$0xf]
    %v971 = vld [vmem:[#allocation8 + $0x180] sm:$0xff]
    %v972 = vld [vmem:[#allocation8 + $0x188] sm:$0xf]
    %v973 = vld [vmem:[#allocation8 + $0x18c] sm:$0xff]
    %v974 = vld [vmem:[#allocation8 + $0x194] sm:$0xf]
    %v975 = vld [vmem:[#allocation8 + $0x198] sm:$0xff]
    %v976 = vld [vmem:[#allocation8 + $0x1a0] sm:$0xf]
    %v977 = vld [vmem:[#allocation8 + $0x1a4] sm:$0xff]
    %v978 = vld [vmem:[#allocation8 + $0x1ac] sm:$0xf]
    %v979 = vld [vmem:[#allocation8 + $0x1b0] sm:$0xff]
    %v980 = vld [vmem:[#allocation8 + $0x1b8] sm:$0xf]
    %v981 = vld [vmem:[#allocation8 + $0x1bc] sm:$0xff]
    %v982 = vld [vmem:[#allocation8 + $0x1c4] sm:$0xf]
    %v983 = vld [vmem:[#allocation8 + $0x1c8] sm:$0xff]
    %v984 = vld [vmem:[#allocation8 + $0x1d0] sm:$0xf]
    %v985 = vld [vmem:[#allocation8 + $0x1d4] sm:$0xff]
    %v986 = vld [vmem:[#allocation8 + $0x1dc] sm:$0xf]
    %v987 = vld [vmem:[#allocation8 + $0x1e0] sm:$0xff]
    %v988 = vld [vmem:[#allocation8 + $0x1e8] sm:$0xf]
    %v989 = vld [vmem:[#allocation8 + $0x1ec] sm:$0xff]
    %v990 = vld [vmem:[#allocation8 + $0x1f4] sm:$0xf]
    %v991 = vld [vmem:[#allocation8 + $0x1f8] sm:$0xff]
    %v992 = vld [vmem:[#allocation8 + $0x200] sm:$0xf]
    %v993 = vld [vmem:[#allocation8 + $0x204] sm:$0xff]
    %v994 = vld [vmem:[#allocation8 + $0x20c] sm:$0xf]
    %v995 = vld [vmem:[#allocation8 + $0x210] sm:$0xff]
    %v996 = vld [vmem:[#allocation8 + $0x218] sm:$0xf]
    %v997 = vld [vmem:[#allocation8 + $0x21c] sm:$0xff]
    %v998 = vld [vmem:[#allocation8 + $0x224] sm:$0xf]
    %v999 = vld [vmem:[#allocation8 + $0x228] sm:$0xff]
    %v1000 = vld [vmem:[#allocation8 + $0x230] sm:$0xf]
    %v1001 = vld [vmem:[#allocation8 + $0x234] sm:$0xff]
    %v1002 = vld [vmem:[#allocation8 + $0x23c] sm:$0xf]
    %v1003 = vld [vmem:[%s6] sm:$0x7]
    %v1005 = vlaneseq
    %v1006 = vshrl.u32 %v1005, 7
    %v1007 = vsub.s32 0, %v1006
    %v1008 = vrot.slane %v1003, %v1007
    %v1009 = vlaneseq
    %v1010 = vshrl.u32 %v1009, 7
    %v1011 = vsub.s32 1, %v1010
    %v1012 = vrot.slane %v1003, %v1011
    %v1013 = vlaneseq
    %v1014 = vshrl.u32 %v1013, 7
    %v1015 = vsub.s32 2, %v1014
    %v1016 = vrot.slane %v1003, %v1015
    %v1116 = vunpack.c.l.b16 %v907
    %v1117 = vunpack.c.h.b16 %v907
    %v1118 = vunpack.c.l.b16 %v908
    %v1119 = vunpack.c.l.b16 %v909
    %v1120 = vunpack.c.h.b16 %v909
    %v1121 = vunpack.c.l.b16 %v910
    %v1122 = vunpack.c.l.b16 %v911
    %v1123 = vunpack.c.h.b16 %v911
    %v1124 = vunpack.c.l.b16 %v912
    %v1125 = vunpack.c.l.b16 %v913
    %v1126 = vunpack.c.h.b16 %v913
    %v1127 = vunpack.c.l.b16 %v914
    %v1128 = vunpack.c.l.b16 %v915
    %v1129 = vunpack.c.h.b16 %v915
    %v1130 = vunpack.c.l.b16 %v916
    %v1131 = vunpack.c.l.b16 %v917
    %v1132 = vunpack.c.h.b16 %v917
    %v1133 = vunpack.c.l.b16 %v918
    %v1134 = vunpack.c.l.b16 %v919
    %v1135 = vunpack.c.h.b16 %v919
    %v1136 = vunpack.c.l.b16 %v920
    %v1137 = vunpack.c.l.b16 %v921
    %v1138 = vunpack.c.h.b16 %v921
    %v1139 = vunpack.c.l.b16 %v922
    %v1140 = vunpack.c.l.b16 %v923
    %v1141 = vunpack.c.h.b16 %v923
    %v1142 = vunpack.c.l.b16 %v924
    %v1143 = vunpack.c.l.b16 %v925
    %v1144 = vunpack.c.h.b16 %v925
    %v1145 = vunpack.c.l.b16 %v926
    %v1146 = vunpack.c.l.b16 %v927
    %v1147 = vunpack.c.h.b16 %v927
    %v1148 = vunpack.c.l.b16 %v928
    %v1149 = vunpack.c.l.b16 %v929
    %v1150 = vunpack.c.h.b16 %v929
    %v1151 = vunpack.c.l.b16 %v930
    %v1152 = vunpack.c.l.b16 %v931
    %v1153 = vunpack.c.h.b16 %v931
    %v1154 = vunpack.c.l.b16 %v932
    %v1155 = vunpack.c.l.b16 %v933
    %v1156 = vunpack.c.h.b16 %v933
    %v1157 = vunpack.c.l.b16 %v934
    %v1158 = vunpack.c.l.b16 %v935
    %v1159 = vunpack.c.h.b16 %v935
    %v1160 = vunpack.c.l.b16 %v936
    %v1161 = vunpack.c.l.b16 %v937
    %v1162 = vunpack.c.h.b16 %v937
    %v1163 = vunpack.c.l.b16 %v938
    %v1164 = vunpack.c.l.b16 %v939
    %v1165 = vunpack.c.h.b16 %v939
    %v1166 = vunpack.c.l.b16 %v940
    %v1167 = vunpack.c.l.b16 %v941
    %v1168 = vunpack.c.h.b16 %v941
    %v1169 = vunpack.c.l.b16 %v942
    %v1170 = vunpack.c.l.b16 %v943
    %v1171 = vunpack.c.h.b16 %v943
    %v1172 = vunpack.c.l.b16 %v944
    %v1173 = vunpack.c.l.b16 %v945
    %v1174 = vunpack.c.h.b16 %v945
    %v1175 = vunpack.c.l.b16 %v946
    %v1176 = vunpack.c.l.b16 %v947
    %v1177 = vunpack.c.h.b16 %v947
    %v1178 = vunpack.c.l.b16 %v948
    %v1179 = vunpack.c.l.b16 %v949
    %v1180 = vunpack.c.h.b16 %v949
    %v1181 = vunpack.c.l.b16 %v950
    %v1182 = vunpack.c.l.b16 %v951
    %v1183 = vunpack.c.h.b16 %v951
    %v1184 = vunpack.c.l.b16 %v952
    %v1185 = vunpack.c.l.b16 %v953
    %v1186 = vunpack.c.h.b16 %v953
    %v1187 = vunpack.c.l.b16 %v954
    %v1188 = vunpack.c.l.b16 %v955
    %v1189 = vunpack.c.h.b16 %v955
    %v1190 = vunpack.c.l.b16 %v956
    %v1191 = vunpack.c.l.b16 %v957
    %v1192 = vunpack.c.h.b16 %v957
    %v1193 = vunpack.c.l.b16 %v958
    %v1194 = vunpack.c.l.b16 %v959
    %v1195 = vunpack.c.h.b16 %v959
    %v1196 = vunpack.c.l.b16 %v960
    %v1197 = vunpack.c.l.b16 %v961
    %v1198 = vunpack.c.h.b16 %v961
    %v1199 = vunpack.c.l.b16 %v962
    %v1200 = vunpack.c.l.b16 %v963
    %v1201 = vunpack.c.h.b16 %v963
    %v1202 = vunpack.c.l.b16 %v964
    %v1203 = vunpack.c.l.b16 %v965
    %v1204 = vunpack.c.h.b16 %v965
    %v1205 = vunpack.c.l.b16 %v966
    %v1206 = vunpack.c.l.b16 %v967
    %v1207 = vunpack.c.h.b16 %v967
    %v1208 = vunpack.c.l.b16 %v968
    %v1209 = vunpack.c.l.b16 %v969
    %v1210 = vunpack.c.h.b16 %v969
    %v1211 = vunpack.c.l.b16 %v970
    %v1212 = vunpack.c.l.b16 %v971
    %v1213 = vunpack.c.h.b16 %v971
    %v1214 = vunpack.c.l.b16 %v972
    %v1215 = vunpack.c.l.b16 %v973
    %v1216 = vunpack.c.h.b16 %v973
    %v1217 = vunpack.c.l.b16 %v974
    %v1218 = vunpack.c.l.b16 %v975
    %v1219 = vunpack.c.h.b16 %v975
    %v1220 = vunpack.c.l.b16 %v976
    %v1221 = vunpack.c.l.b16 %v977
    %v1222 = vunpack.c.h.b16 %v977
    %v1223 = vunpack.c.l.b16 %v978
    %v1224 = vunpack.c.l.b16 %v979
    %v1225 = vunpack.c.h.b16 %v979
    %v1226 = vunpack.c.l.b16 %v980
    %v1227 = vunpack.c.l.b16 %v981
    %v1228 = vunpack.c.h.b16 %v981
    %v1229 = vunpack.c.l.b16 %v982
    %v1230 = vunpack.c.l.b16 %v983
    %v1231 = vunpack.c.h.b16 %v983
    %v1232 = vunpack.c.l.b16 %v984
    %v1233 = vunpack.c.l.b16 %v985
    %v1234 = vunpack.c.h.b16 %v985
    %v1235 = vunpack.c.l.b16 %v986
    %v1236 = vunpack.c.l.b16 %v987
    %v1237 = vunpack.c.h.b16 %v987
    %v1238 = vunpack.c.l.b16 %v988
    %v1239 = vunpack.c.l.b16 %v989
    %v1240 = vunpack.c.h.b16 %v989
    %v1241 = vunpack.c.l.b16 %v990
    %v1242 = vunpack.c.l.b16 %v991
    %v1243 = vunpack.c.h.b16 %v991
    %v1244 = vunpack.c.l.b16 %v992
    %v1245 = vunpack.c.l.b16 %v993
    %v1246 = vunpack.c.h.b16 %v993
    %v1247 = vunpack.c.l.b16 %v994
    %v1248 = vunpack.c.l.b16 %v995
    %v1249 = vunpack.c.h.b16 %v995
    %v1250 = vunpack.c.l.b16 %v996
    %v1251 = vunpack.c.l.b16 %v997
    %v1252 = vunpack.c.h.b16 %v997
    %v1253 = vunpack.c.l.b16 %v998
    %v1254 = vunpack.c.l.b16 %v999
    %v1255 = vunpack.c.h.b16 %v999
    %v1256 = vunpack.c.l.b16 %v1000
    %v1257 = vunpack.c.l.b16 %v1001
    %v1258 = vunpack.c.h.b16 %v1001
    %v1259 = vunpack.c.l.b16 %v1002
    %v1260 = vpack.c.b16 %v1119, %v1116
    %v1261 = vpack.c.b16 %v1120, %v1117
    %v1262 = vpack.c.b16 %v1121, %v1118
    %v1263 = vpack.c.b16 %v1125, %v1122
    %v1264 = vpack.c.b16 %v1126, %v1123
    %v1265 = vpack.c.b16 %v1127, %v1124
    %v1266 = vpack.c.b16 %v1131, %v1128
    %v1267 = vpack.c.b16 %v1132, %v1129
    %v1268 = vpack.c.b16 %v1133, %v1130
    %v1269 = vpack.c.b16 %v1137, %v1134
    %v1270 = vpack.c.b16 %v1138, %v1135
    %v1271 = vpack.c.b16 %v1139, %v1136
    %v1272 = vpack.c.b16 %v1143, %v1140
    %v1273 = vpack.c.b16 %v1144, %v1141
    %v1274 = vpack.c.b16 %v1145, %v1142
    %v1275 = vpack.c.b16 %v1149, %v1146
    %v1276 = vpack.c.b16 %v1150, %v1147
    %v1277 = vpack.c.b16 %v1151, %v1148
    %v1278 = vpack.c.b16 %v1155, %v1152
    %v1279 = vpack.c.b16 %v1156, %v1153
    %v1280 = vpack.c.b16 %v1157, %v1154
    %v1281 = vpack.c.b16 %v1161, %v1158
    %v1282 = vpack.c.b16 %v1162, %v1159
    %v1283 = vpack.c.b16 %v1163, %v1160
    %v1284 = vpack.c.b16 %v1167, %v1164
    %v1285 = vpack.c.b16 %v1168, %v1165
    %v1286 = vpack.c.b16 %v1169, %v1166
    %v1287 = vpack.c.b16 %v1173, %v1170
    %v1288 = vpack.c.b16 %v1174, %v1171
    %v1289 = vpack.c.b16 %v1175, %v1172
    %v1290 = vpack.c.b16 %v1179, %v1176
    %v1291 = vpack.c.b16 %v1180, %v1177
    %v1292 = vpack.c.b16 %v1181, %v1178
    %v1293 = vpack.c.b16 %v1185, %v1182
    %v1294 = vpack.c.b16 %v1186, %v1183
    %v1295 = vpack.c.b16 %v1187, %v1184
    %v1296 = vpack.c.b16 %v1191, %v1188
    %v1297 = vpack.c.b16 %v1192, %v1189
    %v1298 = vpack.c.b16 %v1193, %v1190
    %v1299 = vpack.c.b16 %v1197, %v1194
    %v1300 = vpack.c.b16 %v1198, %v1195
    %v1301 = vpack.c.b16 %v1199, %v1196
    %v1302 = vpack.c.b16 %v1203, %v1200
    %v1303 = vpack.c.b16 %v1204, %v1201
    %v1304 = vpack.c.b16 %v1205, %v1202
    %v1305 = vpack.c.b16 %v1209, %v1206
    %v1306 = vpack.c.b16 %v1210, %v1207
    %v1307 = vpack.c.b16 %v1211, %v1208
    %v1308 = vpack.c.b16 %v1215, %v1212
    %v1309 = vpack.c.b16 %v1216, %v1213
    %v1310 = vpack.c.b16 %v1217, %v1214
    %v1311 = vpack.c.b16 %v1221, %v1218
    %v1312 = vpack.c.b16 %v1222, %v1219
    %v1313 = vpack.c.b16 %v1223, %v1220
    %v1314 = vpack.c.b16 %v1227, %v1224
    %v1315 = vpack.c.b16 %v1228, %v1225
    %v1316 = vpack.c.b16 %v1229, %v1226
    %v1317 = vpack.c.b16 %v1233, %v1230
    %v1318 = vpack.c.b16 %v1234, %v1231
    %v1319 = vpack.c.b16 %v1235, %v1232
    %v1320 = vpack.c.b16 %v1239, %v1236
    %v1321 = vpack.c.b16 %v1240, %v1237
    %v1322 = vpack.c.b16 %v1241, %v1238
    %v1323 = vpack.c.b16 %v1245, %v1242
    %v1324 = vpack.c.b16 %v1246, %v1243
    %v1325 = vpack.c.b16 %v1247, %v1244
    %v1326 = vpack.c.b16 %v1251, %v1248
    %v1327 = vpack.c.b16 %v1252, %v1249
    %v1328 = vpack.c.b16 %v1253, %v1250
    %v1329 = vpack.c.b16 %v1257, %v1254
    %v1330 = vpack.c.b16 %v1258, %v1255
    %v1331 = vpack.c.b16 %v1259, %v1256
    %1404 = vmatprep.subr.bf16.mxu0 %v1282
    %1405 = vmatpush1.bf16.msra.mxu0 %v1281
    %1406 = vmatprep.subr.bf16.mxu0 %v1279
    %1407 = vmatpush1.bf16.msra.mxu0 %v1278
    %1408 = vmatprep.subr.bf16.mxu0 %v1276
    %1409 = vmatpush1.bf16.msra.mxu0 %v1275
    %1410 = vmatprep.subr.bf16.mxu0 %v1273
    %1411 = vmatpush1.bf16.msra.mxu0 %v1272
    %1412 = vmatprep.subr.bf16.mxu0 %v1270
    %1413 = vmatpush1.bf16.msra.mxu0 %v1269
    %1414 = vmatprep.subr.bf16.mxu0 %v1267
    %1415 = vmatpush1.bf16.msra.mxu0 %v1266
    %1416 = vmatprep.subr.bf16.mxu0 %v1264
    %1417 = vmatpush1.bf16.msra.mxu0 %v1263
    %1418 = vmatprep.subr.bf16.mxu0 %v1261
    %1419 = vmatpush1.bf16.msra.mxu0 %v1260
    %1420 = vmatprep.subr.bf16.mxu0 %v1306
    %1421 = vmatpush2.bf16.msra.mxu0 %v1305
    %1422 = vmatprep.subr.bf16.mxu0 %v1303
    %1423 = vmatpush2.bf16.msra.mxu0 %v1302
    %1424 = vmatprep.subr.bf16.mxu0 %v1300
    %1425 = vmatpush2.bf16.msra.mxu0 %v1299
    %1426 = vmatprep.subr.bf16.mxu0 %v1297
    %1427 = vmatpush2.bf16.msra.mxu0 %v1296
    %1428 = vmatprep.subr.bf16.mxu0 %v1294
    %1429 = vmatpush2.bf16.msra.mxu0 %v1293
    %1430 = vmatprep.subr.bf16.mxu0 %v1291
    %1431 = vmatpush2.bf16.msra.mxu0 %v1290
    %1432 = vmatprep.subr.bf16.mxu0 %v1288
    %1433 = vmatpush2.bf16.msra.mxu0 %v1287
    %1434 = vmatprep.subr.bf16.mxu0 %v1285
    %1435 = vmatpush2.bf16.msra.mxu0 %v1284
    %1436 = vmatprep.mubr.bf16.mxu0 %v905
    %1437 = vmatmul.mubr.bf16.gmra.mxu0 %v904
    %v1438 = vpop.f32.mrf.mxu0
    %v1439 = vadd.f32 %v1008, %v1438
    %v1440 = vpop.f32.mrf.mxu0
    %v1441 = vadd.f32 %v1012, %v1440
    %v1442 = vpop.f32.mrf.mxu0
    %v1443 = vpop.f32.mrf.mxu0
    %1444 = vdwg.mxu0
    %1445 = vmatprep.subr.bf16.mxu0 %v1330
    %1446 = vmatpush1.bf16.msra.mxu0 %v1329
    %1447 = vmatprep.subr.bf16.mxu0 %v1327
    %1448 = vmatpush1.bf16.msra.mxu0 %v1326
    %1449 = vmatprep.subr.bf16.mxu0 %v1324
    %1450 = vmatpush1.bf16.msra.mxu0 %v1323
    %1451 = vmatprep.subr.bf16.mxu0 %v1321
    %1452 = vmatpush1.bf16.msra.mxu0 %v1320
    %1453 = vmatprep.subr.bf16.mxu0 %v1318
    %1454 = vmatpush1.bf16.msra.mxu0 %v1317
    %1455 = vmatprep.subr.bf16.mxu0 %v1315
    %1456 = vmatpush1.bf16.msra.mxu0 %v1314
    %1457 = vmatprep.subr.bf16.mxu0 %v1312
    %1458 = vmatpush1.bf16.msra.mxu0 %v1311
    %1459 = vmatprep.subr.bf16.mxu0 %v1309
    %1460 = vmatpush1.bf16.msra.mxu0 %v1308
    %1461 = vmatprep.subr.bf16.mxu0 0
    %1462 = vmatpush2.bf16.msra.mxu0 0
    %1463 = vmatprep.subr.bf16.mxu0 0
    %1464 = vmatpush2.bf16.msra.mxu0 0
    %1465 = vmatprep.subr.bf16.mxu0 0
    %1466 = vmatpush2.bf16.msra.mxu0 0
    %1467 = vmatprep.subr.bf16.mxu0 0
    %1468 = vmatpush2.bf16.msra.mxu0 0
    %1469 = vmatprep.subr.bf16.mxu0 0
    %1470 = vmatpush2.bf16.msra.mxu0 0
    %1471 = vmatprep.subr.bf16.mxu0 0
    %1472 = vmatpush2.bf16.msra.mxu0 0
    %1473 = vmatprep.subr.bf16.mxu0 0
    %1474 = vmatpush2.bf16.msra.mxu0 0
    %1475 = vmatprep.subr.bf16.mxu0 0
    %1476 = vmatpush2.bf16.msra.mxu0 0
    %1477 = vmatprep.mubr.bf16.mxu0 0
    %1478 = vmatmul.mubr.bf16.gmra.mxu0 %v906
    %v1479 = vpop.f32.mrf.mxu0
    %v1480 = vadd.f32 %v1439, %v1479
    %v1481 = vpop.f32.mrf.mxu0
    %v1482 = vadd.f32 %v1441, %v1481
    %v1483 = vpop.f32.mrf.mxu0
    %v1484 = vpop.f32.mrf.mxu0
    %1485 = vdwg.mxu0
    %1486 = vmatprep.subr.bf16.mxu0 0
    %1487 = vmatpush1.bf16.msra.mxu0 %v1283
    %1488 = vmatprep.subr.bf16.mxu0 0
    %1489 = vmatpush1.bf16.msra.mxu0 %v1280
    %1490 = vmatprep.subr.bf16.mxu0 0
    %1491 = vmatpush1.bf16.msra.mxu0 %v1277
    %1492 = vmatprep.subr.bf16.mxu0 0
    %1493 = vmatpush1.bf16.msra.mxu0 %v1274
    %1494 = vmatprep.subr.bf16.mxu0 0
    %1495 = vmatpush1.bf16.msra.mxu0 %v1271
    %1496 = vmatprep.subr.bf16.mxu0 0
    %1497 = vmatpush1.bf16.msra.mxu0 %v1268
    %1498 = vmatprep.subr.bf16.mxu0 0
    %1499 = vmatpush1.bf16.msra.mxu0 %v1265
    %1500 = vmatprep.subr.bf16.mxu0 0
    %1501 = vmatpush1.bf16.msra.mxu0 %v1262
    %1502 = vmatprep.subr.bf16.mxu0 0
    %1503 = vmatpush2.bf16.msra.mxu0 %v1307
    %1504 = vmatprep.subr.bf16.mxu0 0
    %1505 = vmatpush2.bf16.msra.mxu0 %v1304
    %1506 = vmatprep.subr.bf16.mxu0 0
    %1507 = vmatpush2.bf16.msra.mxu0 %v1301
    %1508 = vmatprep.subr.bf16.mxu0 0
    %1509 = vmatpush2.bf16.msra.mxu0 %v1298
    %1510 = vmatprep.subr.bf16.mxu0 0
    %1511 = vmatpush2.bf16.msra.mxu0 %v1295
    %1512 = vmatprep.subr.bf16.mxu0 0
    %1513 = vmatpush2.bf16.msra.mxu0 %v1292
    %1514 = vmatprep.subr.bf16.mxu0 0
    %1515 = vmatpush2.bf16.msra.mxu0 %v1289
    %1516 = vmatprep.subr.bf16.mxu0 0
    %1517 = vmatpush2.bf16.msra.mxu0 %v1286
    %1518 = vmatprep.mubr.bf16.mxu0 %v905
    %1519 = vmatmul.mubr.bf16.gmra.mxu0 %v904
    %v1520 = vpop.f32.mrf.mxu0
    %v1521 = vadd.f32 %v1016, %v1520
    %v1522 = vpop.f32.mrf.mxu0
    %v1523 = vpop.f32.mrf.mxu0
    %v1524 = vpop.f32.mrf.mxu0
    %1525 = vdwg.mxu0
    %1526 = vmatprep.subr.bf16.mxu0 0
    %1527 = vmatpush1.bf16.msra.mxu0 %v1331
    %1528 = vmatprep.subr.bf16.mxu0 0
    %1529 = vmatpush1.bf16.msra.mxu0 %v1328
    %1530 = vmatprep.subr.bf16.mxu0 0
    %1531 = vmatpush1.bf16.msra.mxu0 %v1325
    %1532 = vmatprep.subr.bf16.mxu0 0
    %1533 = vmatpush1.bf16.msra.mxu0 %v1322
    %1534 = vmatprep.subr.bf16.mxu0 0
    %1535 = vmatpush1.bf16.msra.mxu0 %v1319
    %1536 = vmatprep.subr.bf16.mxu0 0
    %1537 = vmatpush1.bf16.msra.mxu0 %v1316
    %1538 = vmatprep.subr.bf16.mxu0 0
    %1539 = vmatpush1.bf16.msra.mxu0 %v1313
    %1540 = vmatprep.subr.bf16.mxu0 0
    %1541 = vmatpush1.bf16.msra.mxu0 %v1310
    %1542 = vmatprep.subr.bf16.mxu0 0
    %1543 = vmatpush2.bf16.msra.mxu0 0
    %1544 = vmatprep.subr.bf16.mxu0 0
    %1545 = vmatpush2.bf16.msra.mxu0 0
    %1546 = vmatprep.subr.bf16.mxu0 0
    %1547 = vmatpush2.bf16.msra.mxu0 0
    %1548 = vmatprep.subr.bf16.mxu0 0
    %1549 = vmatpush2.bf16.msra.mxu0 0
    %1550 = vmatprep.subr.bf16.mxu0 0
    %1551 = vmatpush2.bf16.msra.mxu0 0
    %1552 = vmatprep.subr.bf16.mxu0 0
    %1553 = vmatpush2.bf16.msra.mxu0 0
    %1554 = vmatprep.subr.bf16.mxu0 0
    %1555 = vmatpush2.bf16.msra.mxu0 0
    %1556 = vmatprep.subr.bf16.mxu0 0
    %1557 = vmatpush2.bf16.msra.mxu0 0
    %1558 = vmatprep.mubr.bf16.mxu0 0
    %1559 = vmatmul.mubr.bf16.gmra.mxu0 %v906
    %v1560 = vpop.f32.mrf.mxu0
    %v1561 = vadd.f32 %v1521, %v1560
    %v1562 = vpop.f32.mrf.mxu0
    %v1563 = vpop.f32.mrf.mxu0
    %v1564 = vpop.f32.mrf.mxu0
    %1565 = vdwg.mxu0
    %vm1566 = vcmp.gt.f32.partialorder %v1480, 0.0
    %vm1567 = vcmp.gt.f32.partialorder %v1482, 0.0
    %vm1568 = vcmp.gt.f32.partialorder %v1561, 0.0
    %v1569 = vmul.f32 %v1480, 0.1
    %v1570 = vmul.f32 %v1482, 0.1
    %v1571 = vmul.f32 %v1561, 0.1
    %v1572 = vsel %vm1566, %v1480, %v1569
    %v1573 = vsel %vm1567, %v1482, %v1570
    %v1574 = vsel %vm1568, %v1561, %v1571
    %v1575 = vpack.c.bf16 %v1572, %v1572
    %v1576 = vpack.c.bf16 %v1573, %v1573
    %v1577 = vpack.c.bf16 %v1574, %v1574
    %v1578 = vld [vmem:[#allocation10] sm:$0xf]
    %v1579 = vld [vmem:[#allocation10 + $0x4] sm:$0xf]
    %v1580 = vld [vmem:[#allocation10 + $0x8] sm:$0xf]
    %v1581 = vld [vmem:[#allocation10 + $0xc] sm:$0xf]
    %v1582 = vld [vmem:[#allocation10 + $0x10] sm:$0xf]
    %v1583 = vld [vmem:[#allocation10 + $0x14] sm:$0xf]
    %v1584 = vld [vmem:[#allocation10 + $0x18] sm:$0xf]
    %v1585 = vld [vmem:[#allocation10 + $0x1c] sm:$0xf]
    %v1586 = vld [vmem:[#allocation10 + $0x20] sm:$0xf]
    %v1587 = vld [vmem:[#allocation10 + $0x24] sm:$0xf]
    %v1588 = vld [vmem:[#allocation10 + $0x28] sm:$0xf]
    %v1589 = vld [vmem:[#allocation10 + $0x2c] sm:$0xf]
    %v1590 = vld [vmem:[#allocation10 + $0x30] sm:$0xf]
    %v1591 = vld [vmem:[#allocation10 + $0x34] sm:$0xf]
    %v1592 = vld [vmem:[#allocation10 + $0x38] sm:$0xf]
    %v1593 = vld [vmem:[#allocation10 + $0x3c] sm:$0xf]
    %v1594 = vld [vmem:[#allocation10 + $0x40] sm:$0xf]
    %v1595 = vld [vmem:[#allocation10 + $0x44] sm:$0xf]
    %v1596 = vld [vmem:[#allocation10 + $0x48] sm:$0xf]
    %v1597 = vld [vmem:[#allocation10 + $0x4c] sm:$0xf]
    %v1598 = vld [vmem:[#allocation10 + $0x50] sm:$0xf]
    %v1599 = vld [vmem:[#allocation10 + $0x54] sm:$0xf]
    %v1600 = vld [vmem:[#allocation10 + $0x58] sm:$0xf]
    %v1601 = vld [vmem:[#allocation10 + $0x5c] sm:$0xf]
    %v1602 = vld [vmem:[#allocation10 + $0x60] sm:$0xf]
    %v1603 = vld [vmem:[#allocation10 + $0x64] sm:$0xf]
    %v1604 = vld [vmem:[#allocation10 + $0x68] sm:$0xf]
    %v1605 = vld [vmem:[#allocation10 + $0x6c] sm:$0xf]
    %v1606 = vld [vmem:[#allocation10 + $0x70] sm:$0xf]
    %v1607 = vld [vmem:[#allocation10 + $0x74] sm:$0xf]
    %v1608 = vld [vmem:[#allocation10 + $0x78] sm:$0xf]
    %v1609 = vld [vmem:[#allocation10 + $0x7c] sm:$0xf]
    %v1610 = vld [vmem:[#allocation10 + $0x80] sm:$0xf]
    %v1611 = vld [vmem:[#allocation10 + $0x84] sm:$0xf]
    %v1612 = vld [vmem:[#allocation10 + $0x88] sm:$0xf]
    %v1613 = vld [vmem:[#allocation10 + $0x8c] sm:$0xf]
    %v1614 = vld [vmem:[#allocation10 + $0x90] sm:$0xf]
    %v1615 = vld [vmem:[#allocation10 + $0x94] sm:$0xf]
    %v1616 = vld [vmem:[#allocation10 + $0x98] sm:$0xf]
    %v1617 = vld [vmem:[#allocation10 + $0x9c] sm:$0xf]
    %v1618 = vld [vmem:[#allocation10 + $0xa0] sm:$0xf]
    %v1619 = vld [vmem:[#allocation10 + $0xa4] sm:$0xf]
    %v1620 = vld [vmem:[#allocation10 + $0xa8] sm:$0xf]
    %v1621 = vld [vmem:[#allocation10 + $0xac] sm:$0xf]
    %v1622 = vld [vmem:[#allocation10 + $0xb0] sm:$0xf]
    %v1623 = vld [vmem:[#allocation10 + $0xb4] sm:$0xf]
    %v1624 = vld [vmem:[#allocation10 + $0xb8] sm:$0xf]
    %v1625 = vld [vmem:[#allocation10 + $0xbc] sm:$0xf]
    %v1626 = vld [vmem:[%s8] sm:$0x1]
    %v1628 = vlaneseq
    %v1629 = vshrl.u32 %v1628, 7
    %v1630 = vsub.s32 0, %v1629
    %v1631 = vrot.slane %v1626, %v1630
    %v1681 = vunpack.c.l.b16 %v1578
    %v1682 = vunpack.c.l.b16 %v1579
    %v1683 = vunpack.c.l.b16 %v1580
    %v1684 = vunpack.c.l.b16 %v1581
    %v1685 = vunpack.c.l.b16 %v1582
    %v1686 = vunpack.c.l.b16 %v1583
    %v1687 = vunpack.c.l.b16 %v1584
    %v1688 = vunpack.c.l.b16 %v1585
    %v1689 = vunpack.c.l.b16 %v1586
    %v1690 = vunpack.c.l.b16 %v1587
    %v1691 = vunpack.c.l.b16 %v1588
    %v1692 = vunpack.c.l.b16 %v1589
    %v1693 = vunpack.c.l.b16 %v1590
    %v1694 = vunpack.c.l.b16 %v1591
    %v1695 = vunpack.c.l.b16 %v1592
    %v1696 = vunpack.c.l.b16 %v1593
    %v1697 = vunpack.c.l.b16 %v1594
    %v1698 = vunpack.c.l.b16 %v1595
    %v1699 = vunpack.c.l.b16 %v1596
    %v1700 = vunpack.c.l.b16 %v1597
    %v1701 = vunpack.c.l.b16 %v1598
    %v1702 = vunpack.c.l.b16 %v1599
    %v1703 = vunpack.c.l.b16 %v1600
    %v1704 = vunpack.c.l.b16 %v1601
    %v1705 = vunpack.c.l.b16 %v1602
    %v1706 = vunpack.c.l.b16 %v1603
    %v1707 = vunpack.c.l.b16 %v1604
    %v1708 = vunpack.c.l.b16 %v1605
    %v1709 = vunpack.c.l.b16 %v1606
    %v1710 = vunpack.c.l.b16 %v1607
    %v1711 = vunpack.c.l.b16 %v1608
    %v1712 = vunpack.c.l.b16 %v1609
    %v1713 = vunpack.c.l.b16 %v1610
    %v1714 = vunpack.c.l.b16 %v1611
    %v1715 = vunpack.c.l.b16 %v1612
    %v1716 = vunpack.c.l.b16 %v1613
    %v1717 = vunpack.c.l.b16 %v1614
    %v1718 = vunpack.c.l.b16 %v1615
    %v1719 = vunpack.c.l.b16 %v1616
    %v1720 = vunpack.c.l.b16 %v1617
    %v1721 = vunpack.c.l.b16 %v1618
    %v1722 = vunpack.c.l.b16 %v1619
    %v1723 = vunpack.c.l.b16 %v1620
    %v1724 = vunpack.c.l.b16 %v1621
    %v1725 = vunpack.c.l.b16 %v1622
    %v1726 = vunpack.c.l.b16 %v1623
    %v1727 = vunpack.c.l.b16 %v1624
    %v1728 = vunpack.c.l.b16 %v1625
    %v1729 = vpack.c.b16 %v1682, %v1681
    %v1730 = vpack.c.b16 %v1684, %v1683
    %v1731 = vpack.c.b16 %v1686, %v1685
    %v1732 = vpack.c.b16 %v1688, %v1687
    %v1733 = vpack.c.b16 %v1690, %v1689
    %v1734 = vpack.c.b16 %v1692, %v1691
    %v1735 = vpack.c.b16 %v1694, %v1693
    %v1736 = vpack.c.b16 %v1696, %v1695
    %v1737 = vpack.c.b16 %v1698, %v1697
    %v1738 = vpack.c.b16 %v1700, %v1699
    %v1739 = vpack.c.b16 %v1702, %v1701
    %v1740 = vpack.c.b16 %v1704, %v1703
    %v1741 = vpack.c.b16 %v1706, %v1705
    %v1742 = vpack.c.b16 %v1708, %v1707
    %v1743 = vpack.c.b16 %v1710, %v1709
    %v1744 = vpack.c.b16 %v1712, %v1711
    %v1745 = vpack.c.b16 %v1714, %v1713
    %v1746 = vpack.c.b16 %v1716, %v1715
    %v1747 = vpack.c.b16 %v1718, %v1717
    %v1748 = vpack.c.b16 %v1720, %v1719
    %v1749 = vpack.c.b16 %v1722, %v1721
    %v1750 = vpack.c.b16 %v1724, %v1723
    %v1751 = vpack.c.b16 %v1726, %v1725
    %v1752 = vpack.c.b16 %v1728, %v1727
    %1777 = vmatprep.subr.bf16.mxu0 0
    %1778 = vmatpush1.bf16.msra.mxu0 %v1736
    %1779 = vmatprep.subr.bf16.mxu0 0
    %1780 = vmatpush1.bf16.msra.mxu0 %v1735
    %1781 = vmatprep.subr.bf16.mxu0 0
    %1782 = vmatpush1.bf16.msra.mxu0 %v1734
    %1783 = vmatprep.subr.bf16.mxu0 0
    %1784 = vmatpush1.bf16.msra.mxu0 %v1733
    %1785 = vmatprep.subr.bf16.mxu0 0
    %1786 = vmatpush1.bf16.msra.mxu0 %v1732
    %1787 = vmatprep.subr.bf16.mxu0 0
    %1788 = vmatpush1.bf16.msra.mxu0 %v1731
    %1789 = vmatprep.subr.bf16.mxu0 0
    %1790 = vmatpush1.bf16.msra.mxu0 %v1730
    %1791 = vmatprep.subr.bf16.mxu0 0
    %1792 = vmatpush1.bf16.msra.mxu0 %v1729
    %1793 = vmatprep.subr.bf16.mxu0 0
    %1794 = vmatpush2.bf16.msra.mxu0 %v1744
    %1795 = vmatprep.subr.bf16.mxu0 0
    %1796 = vmatpush2.bf16.msra.mxu0 %v1743
    %1797 = vmatprep.subr.bf16.mxu0 0
    %1798 = vmatpush2.bf16.msra.mxu0 %v1742
    %1799 = vmatprep.subr.bf16.mxu0 0
    %1800 = vmatpush2.bf16.msra.mxu0 %v1741
    %1801 = vmatprep.subr.bf16.mxu0 0
    %1802 = vmatpush2.bf16.msra.mxu0 %v1740
    %1803 = vmatprep.subr.bf16.mxu0 0
    %1804 = vmatpush2.bf16.msra.mxu0 %v1739
    %1805 = vmatprep.subr.bf16.mxu0 0
    %1806 = vmatpush2.bf16.msra.mxu0 %v1738
    %1807 = vmatprep.subr.bf16.mxu0 0
    %1808 = vmatpush2.bf16.msra.mxu0 %v1737
    %1809 = vmatprep.mubr.bf16.mxu0 %v1576
    %1810 = vmatmul.mubr.bf16.gmra.mxu0 %v1575
    %v1811 = vpop.f32.mrf.mxu0
    %v1812 = vadd.f32 %v1631, %v1811
    %v1813 = vpop.f32.mrf.mxu0
    %v1814 = vpop.f32.mrf.mxu0
    %v1815 = vpop.f32.mrf.mxu0
    %1816 = vdwg.mxu0
    %1817 = vmatprep.subr.bf16.mxu0 0
    %1818 = vmatpush1.bf16.msra.mxu0 %v1752
    %1819 = vmatprep.subr.bf16.mxu0 0
    %1820 = vmatpush1.bf16.msra.mxu0 %v1751
    %1821 = vmatprep.subr.bf16.mxu0 0
    %1822 = vmatpush1.bf16.msra.mxu0 %v1750
    %1823 = vmatprep.subr.bf16.mxu0 0
    %1824 = vmatpush1.bf16.msra.mxu0 %v1749
    %1825 = vmatprep.subr.bf16.mxu0 0
    %1826 = vmatpush1.bf16.msra.mxu0 %v1748
    %1827 = vmatprep.subr.bf16.mxu0 0
    %1828 = vmatpush1.bf16.msra.mxu0 %v1747
    %1829 = vmatprep.subr.bf16.mxu0 0
    %1830 = vmatpush1.bf16.msra.mxu0 %v1746
    %1831 = vmatprep.subr.bf16.mxu0 0
    %1832 = vmatpush1.bf16.msra.mxu0 %v1745
    %1833 = vmatprep.subr.bf16.mxu0 0
    %1834 = vmatpush2.bf16.msra.mxu0 0
    %1835 = vmatprep.subr.bf16.mxu0 0
    %1836 = vmatpush2.bf16.msra.mxu0 0
    %1837 = vmatprep.subr.bf16.mxu0 0
    %1838 = vmatpush2.bf16.msra.mxu0 0
    %1839 = vmatprep.subr.bf16.mxu0 0
    %1840 = vmatpush2.bf16.msra.mxu0 0
    %1841 = vmatprep.subr.bf16.mxu0 0
    %1842 = vmatpush2.bf16.msra.mxu0 0
    %1843 = vmatprep.subr.bf16.mxu0 0
    %1844 = vmatpush2.bf16.msra.mxu0 0
    %1845 = vmatprep.subr.bf16.mxu0 0
    %1846 = vmatpush2.bf16.msra.mxu0 0
    %1847 = vmatprep.subr.bf16.mxu0 0
    %1848 = vmatpush2.bf16.msra.mxu0 0
    %1849 = vmatprep.mubr.bf16.mxu0 0
    %1850 = vmatmul.mubr.bf16.gmra.mxu0 %v1577
    %v1851 = vpop.f32.mrf.mxu0
    %v1852 = vadd.f32 %v1812, %v1851
    %v1853 = vpop.f32.mrf.mxu0
    %v1854 = vpop.f32.mrf.mxu0
    %v1855 = vpop.f32.mrf.mxu0
    %1856 = vdwg.mxu0
    %1857 = vst [vmem:[#allocation11] sm:$0xff] %v1852
    // Predicated region
    $region58: #{tpu_custom_call.1} parent=1 // pred_check
      _
    $region59: #{tpu_custom_call.1} parent=1 // pred_check_branch
      %1859 = sbr.rel (0) target = $region61
    $region60: #{tpu_custom_call.1} parent=1 // pred_region
      %s1861 = ssub.s32 128, 128
      %1862 = vsyncadd [#allocation4], %s1861
      %s1864 = sshll.u32 [#allocation11], 4
      %s1865 = int_to_ptr.vmem [resolvable:$true] %s1864
      %1867 = dma.vmem_to_hbm [thread:$0]  %s1865, 128, %s9, [#allocation4]
    $region61: #{tpu_custom_call.1} parent=1 // pred_fallthru
      _
    // Predicated region
    $region62: #{tpu_custom_call.1} parent=1 // pred_check
      _
    $region63: #{tpu_custom_call.1} parent=1 // pred_check_branch
      %1869 = sbr.rel (0) target = $region65
    $region64: #{tpu_custom_call.1} parent=1 // pred_region
      %1870 = dma.done [#allocation4], 128
    $region65: #{tpu_custom_call.1} parent=1 // pred_fallthru
      _
    %1871 = vsyncpa [#allocation3], 1
    %1872 = vsyncpa [#allocation6], 1
    %1873 = vsyncpa [#allocation9], 1
    %1874 = vsyncpa [#allocation4], 1

</llo_original>
